<compile_context>
chip_gen: v5e
topology: v5e:2x2
jax: 0.10.0
libtpu: 0.0.40
codegen_flags: <defaults>
</compile_context>

<pallas_src>
import math

import jax
import jax.numpy as jnp
from jax import lax
from jax.experimental import pallas as pl
from jax.experimental.pallas import tpu as pltpu

# ---------------------------------------------------------------------------
# model hyper-parameters (small, deterministic synthetic model)
# ---------------------------------------------------------------------------
BATCH = 2
SEQ = 8
HIDDEN = 32
NUM_HEADS = 4
HEAD_DIM = HIDDEN // NUM_HEADS          # 8
INTERMEDIATE = 64
VOCAB = 64
VOCAB_PAD = ((VOCAB + 127) // 128) * 128   # lane-dense LM-head width (128)
NUM_LAYERS = 2
EPS = 1e-6
PP_WORLD_SIZE = 1                       # single pipeline stage -> first & last
PP_RANK = 0


def distribute_layers(num_layers, pp_world_size=PP_WORLD_SIZE, pp_rank=PP_RANK):
    """Same layer-distribution logic as the PyTorch module."""
    layers_per_gpu = [
        num_layers // pp_world_size + (1 if i < num_layers % pp_world_size else 0)
        for i in range(pp_world_size)
    ]
    start_layer = sum(layers_per_gpu[:pp_rank])
    return list(range(start_layer, start_layer + layers_per_gpu[pp_rank]))


# ---------------------------------------------------------------------------
# in-kernel helpers (f32 elementwise math everywhere)
# ---------------------------------------------------------------------------
def _rmsnorm(x, w):
    # x: (N, D) f32, w: (1, D) f32
    var = jnp.mean(x * x, axis=-1, keepdims=True)
    return x * lax.rsqrt(var + EPS) * w


# ---------------------------------------------------------------------------
# fused forward kernel (single grid step; whole batch folded into rows)
# ---------------------------------------------------------------------------
def _fused_forward_kernel(x_ref, cos_ref, sin_ref, rot_ref, mask_ref,
                          an_ref, wqkv_ref, wo_ref,
                          mn_ref, wgu_ref, wd_ref,
                          fn_ref, fp_ref, o_ref):
    # Shapes (full blocks):
    #   x_ref    : (BS, D)        f32   residual stream rows (B*S folded)
    #   cos/sin  : (BS, H*hd)     f32   per-row RoPE tables, tiled over heads
    #   rot_ref  : (H*hd, H*hd)   f32   block-diag rotate_half matrix (+/-1)
    #   mask_ref : (BS, BS)       f32   additive block-diag causal mask (0/-1e30)
    #   an/mn    : (L, 1, D)      f32
    #   wqkv     : (L, D, 3*H*hd) bf16  fused Q|K|V
    #   wo       : (L, H*hd, D)   bf16  concat-heads output projection
    #   wgu      : (L, D, 2F)     bf16  fused gate|up
    #   wd       : (L, F, D)      bf16
    #   fn       : (1, D) f32     fp: (D, VPAD) bf16    o: (BS, VPAD) f32
    L = wqkv_ref.shape[0]
    Hhd = cos_ref.shape[1]
    hd = HEAD_DIM
    H = Hhd // hd
    F = wd_ref.shape[1]
    scale = 1.0 / math.sqrt(hd)

    x = x_ref[...]                      # (BS, D) f32
    cos = cos_ref[...]
    sin = sin_ref[...]
    rot = rot_ref[...]
    mask = mask_ref[...]

    # TODO(synk): at realistic layer counts replace the static unroll with
    # lax.fori_loop over the stacked L axis to bound live ranges / vreg use.
    for li in range(L):
        # ---------------- attention block ----------------
        hn = _rmsnorm(x, an_ref[li])                                    # (BS, D)
        qkv = jnp.dot(hn.astype(jnp.bfloat16), wqkv_ref[li],
                      preferred_element_type=jnp.float32)               # (BS, 3*Hhd)
        q = qkv[:, :Hhd]
        k = qkv[:, Hhd:2 * Hhd]
        v = qkv[:, 2 * Hhd:]

        # RoPE on packed-head layout: rotate_half(x) == x @ rot (block-diag ±1)
        q = q * cos + jnp.dot(q, rot, preferred_element_type=jnp.float32) * sin
        k = k * cos + jnp.dot(k, rot, preferred_element_type=jnp.float32) * sin

        q16 = q.astype(jnp.bfloat16)
        k16 = k.astype(jnp.bfloat16)
        v16 = v.astype(jnp.bfloat16)

        # per-head S x S scores (heads only unpacked here); block-diag mask
        # keeps batches independent and enforces causality.
        head_outs = []
        for h in range(H):
            qh = q16[:, h * hd:(h + 1) * hd]                            # (BS, hd)
            kh = k16[:, h * hd:(h + 1) * hd]
            vh = v16[:, h * hd:(h + 1) * hd]
            s = lax.dot_general(qh, kh, (((1,), (1,)), ((), ())),
                                preferred_element_type=jnp.float32)     # (BS, BS)
            s = s * scale + mask
            m = jnp.max(s, axis=-1, keepdims=True)
            p = jnp.exp(s - m)
            denom = jnp.sum(p, axis=-1, keepdims=True)
            p = p * pl.reciprocal(denom, approx=True)
            head_outs.append(jnp.dot(p.astype(jnp.bfloat16), vh,
                                     preferred_element_type=jnp.float32))
        ao = jnp.concatenate(head_outs, axis=-1)                        # (BS, Hhd)

        # concat-heads output projection (single matmul, MXU reduces heads)
        attn = jnp.dot(ao.astype(jnp.bfloat16), wo_ref[li],
                       preferred_element_type=jnp.float32)              # (BS, D)
        x = x + attn

        # ---------------- MLP block (SwiGLU, gate+up fused) ----------------
        hn2 = _rmsnorm(x, mn_ref[li])
        gu = jnp.dot(hn2.astype(jnp.bfloat16), wgu_ref[li],
                     preferred_element_type=jnp.float32)                # (BS, 2F)
        gate = gu[:, :F]
        up = gu[:, F:]
        act = gate * (1.0 / (1.0 + jnp.exp(-gate))) * up                # SiLU * up
        mlp = jnp.dot(act.astype(jnp.bfloat16), wd_ref[li],
                      preferred_element_type=jnp.float32)               # (BS, D)
        x = x + mlp

    # ---------------- final norm + LM head (lane-dense VPAD columns) --------
    hfin = _rmsnorm(x, fn_ref[...])
    o_ref[...] = jnp.dot(hfin.astype(jnp.bfloat16), fp_ref[...],
                         preferred_element_type=jnp.float32)            # (BS, VPAD)


# ---------------------------------------------------------------------------
# pallas_call wrapper
# ---------------------------------------------------------------------------
def _fused_forward_call(x_flat, cos_full, sin_full, rot, mask, packed):
    BS, D = x_flat.shape
    Hhd = cos_full.shape[1]
    L = packed["wqkv"].shape[0]
    F = packed["w_down"].shape[1]
    VPAD = packed["final_proj"].shape[1]

    def full(shape):
        n = len(shape)
        return pl.BlockSpec(shape, lambda i, n=n: (0,) * n)

    # TODO(synk): at realistic D/F/V/L sizes, stream per-layer weights (layer
    # grid axis marked "arbitrary" + pl.Buffered) instead of full VMEM
    # residency; mandatory on v7x (64 MiB VMEM), optional on v5e/v6e.
    out = pl.pallas_call(
        _fused_forward_kernel,
        out_shape=jax.ShapeDtypeStruct((BS, VPAD), jnp.float32),
        grid=(1,),
        in_specs=[
            full((BS, D)),
            full((BS, Hhd)), full((BS, Hhd)),
            full((Hhd, Hhd)),
            full((BS, BS)),
            full((L, 1, D)),
            full((L, D, 3 * Hhd)),
            full((L, Hhd, D)),
            full((L, 1, D)),
            full((L, D, 2 * F)),
            full((L, F, D)),
            full((1, D)),
            full((D, VPAD)),
        ],
        out_specs=full((BS, VPAD)),
        compiler_params=pltpu.CompilerParams(
            dimension_semantics=("arbitrary",)),
    )(x_flat, cos_full, sin_full, rot, mask,
      packed["attn_norm"], packed["wqkv"], packed["wo"],
      packed["mlp_norm"], packed["w_gate_up"], packed["w_down"],
      packed["final_norm"], packed["final_proj"])
    return out


# ---------------------------------------------------------------------------
# parameter init / packing, RoPE tables, mask, module-level forward
# ---------------------------------------------------------------------------
def init_params(key):
    """Raw (PyTorch-layout) f32 parameters; weights stored (in, out)."""
    keys = jax.random.split(key, 3 + NUM_LAYERS)
    params = {
        "embedding": 0.02 * jax.random.normal(keys[0], (VOCAB, HIDDEN), jnp.float32),
        "final_norm": jnp.ones((1, HIDDEN), jnp.float32),
        "final_proj": 0.02 * jax.random.normal(keys[1], (HIDDEN, VOCAB), jnp.float32),
        "layers": [],
    }
    for li in range(NUM_LAYERS):
        k = jax.random.split(keys[3 + li], 7)
        params["layers"].append({
            "attn_norm": jnp.ones((1, HIDDEN), jnp.float32),
            "wq": 0.02 * jax.random.normal(k[0], (HIDDEN, HIDDEN), jnp.float32),
            "wk": 0.02 * jax.random.normal(k[1], (HIDDEN, HIDDEN), jnp.float32),
            "wv": 0.02 * jax.random.normal(k[2], (HIDDEN, HIDDEN), jnp.float32),
            "wo": 0.02 * jax.random.normal(k[3], (HIDDEN, HIDDEN), jnp.float32),
            "mlp_norm": jnp.ones((1, HIDDEN), jnp.float32),
            "w_gate": 0.02 * jax.random.normal(k[4], (HIDDEN, INTERMEDIATE), jnp.float32),
            "w_up": 0.02 * jax.random.normal(k[5], (HIDDEN, INTERMEDIATE), jnp.float32),
            "w_down": 0.02 * jax.random.normal(k[6], (INTERMEDIATE, HIDDEN), jnp.float32),
        })
    return params


def pack_params(raw, layer_ids):
    """Stack this stage's layer weights along a leading layer axis, fuse
    Q|K|V and gate|up along the output axis, cast matmul weights to bf16,
    pad the LM head to 128 columns."""
    bf16 = jnp.bfloat16
    layers = [raw["layers"][li] for li in layer_ids]

    wqkv = jnp.stack([jnp.concatenate([l["wq"], l["wk"], l["wv"]], axis=1)
                      for l in layers], axis=0).astype(bf16)       # (L, D, 3D)
    wo = jnp.stack([l["wo"] for l in layers], axis=0).astype(bf16)  # (L, H*hd, D)
    w_gate_up = jnp.stack([jnp.concatenate([l["w_gate"], l["w_up"]], axis=1)
                           for l in layers], axis=0).astype(bf16)  # (L, D, 2F)
    w_down = jnp.stack([l["w_down"] for l in layers], axis=0).astype(bf16)  # (L, F, D)
    attn_norm = jnp.stack([l["attn_norm"] for l in layers], axis=0)  # (L, 1, D) f32
    mlp_norm = jnp.stack([l["mlp_norm"] for l in layers], axis=0)

    fp_pad = jnp.pad(raw["final_proj"],
                     ((0, 0), (0, VOCAB_PAD - VOCAB))).astype(bf16)  # (D, VPAD)

    return {
        "embedding": raw["embedding"],              # f32, gathered in wrapper
        "attn_norm": attn_norm, "mlp_norm": mlp_norm,
        "wqkv": wqkv, "wo": wo,
        "w_gate_up": w_gate_up, "w_down": w_down,
        "final_norm": raw["final_norm"],            # (1, D) f32
        "final_proj": fp_pad,                       # (D, VPAD) bf16
    }


def rope_cos_sin(position_ids, head_dim):
    # position_ids: (B, S) int32 -> cos/sin: (B, S, head_dim) f32
    inv_freq = 1.0 / (10000.0 ** (jnp.arange(0, head_dim, 2, dtype=jnp.float32) / head_dim))
    ang = position_ids[..., None].astype(jnp.float32) * inv_freq      # (B, S, hd/2)
    cos = jnp.concatenate([jnp.cos(ang), jnp.cos(ang)], axis=-1)
    sin = jnp.concatenate([jnp.sin(ang), jnp.sin(ang)], axis=-1)
    return cos, sin


def rotate_half_matrix(num_heads, head_dim):
    """Block-diagonal (H*hd, H*hd) matrix R such that x @ R == rotate_half(x)
    applied independently to every head chunk of the lane-packed layout."""
    half = head_dim // 2
    idx = jnp.arange(half)
    rb = jnp.zeros((head_dim, head_dim), jnp.float32)
    rb = rb.at[idx + half, idx].set(-1.0)   # out[j <  half] = -in[j + half]
    rb = rb.at[idx, idx + half].set(1.0)    # out[j >= half] =  in[j - half]
    return jnp.kron(jnp.eye(num_heads, dtype=jnp.float32), rb)


def block_causal_mask(batch, seq):
    """Additive (B*S, B*S) mask: 0 where same sequence and causal, -1e30 else."""
    idx = jnp.arange(batch * seq)
    b = idx // seq
    s = idx % seq
    ok = (b[:, None] == b[None, :]) & (s[:, None] >= s[None, :])
    return jnp.where(ok, 0.0, -1e30).astype(jnp.float32)


def pipeline_parallel_forward(packed, input_ids, position_ids, hidden_states=None):
    """Mirrors PipelineParallel.forward for the first+last stage, fully fused."""
    if hidden_states is None:
        # first stage: token embedding (row gather done by XLA in the wrapper).
        # TODO(synk): at realistic vocab sizes move this to a scalar-prefetch
        # row gather (PrefetchScalarGridSpec + pl.Element) feeding the kernel.
        x = jnp.take(packed["embedding"], input_ids, axis=0)          # (B, S, D)
    else:
        x = hidden_states.astype(jnp.float32)   # embedding is Identity here
    B, S, D = x.shape

    cos, sin = rope_cos_sin(position_ids, HEAD_DIM)                    # (B, S, hd)
    cos_full = jnp.tile(cos, (1, 1, NUM_HEADS)).reshape(B * S, NUM_HEADS * HEAD_DIM)
    sin_full = jnp.tile(sin, (1, 1, NUM_HEADS)).reshape(B * S, NUM_HEADS * HEAD_DIM)
    rot = rotate_half_matrix(NUM_HEADS, HEAD_DIM)
    mask = block_causal_mask(B, S)

    out = _fused_forward_call(x.reshape(B * S, D), cos_full, sin_full,
                              rot, mask, packed)                       # (BS, VPAD)
    return out.reshape(B, S, VOCAB_PAD)[..., :VOCAB]


# TODO(synk): the .backward() method (torch.autograd AFAB pipeline gradient
# bookkeeping + torch.distributed send/recv) is scheduling glue, not a kernel;
# it is not translated here.

# ---------------------------------------------------------------------------
if __name__ == "__main__":
    key = jax.random.PRNGKey(0)
    pkey, ikey = jax.random.split(key)
    raw_params = init_params(pkey)
    packed_params = pack_params(raw_params, distribute_layers(NUM_LAYERS))

    input_ids = jax.random.randint(ikey, (BATCH, SEQ), 0, VOCAB, dtype=jnp.int32)
    position_ids = jnp.broadcast_to(jnp.arange(SEQ, dtype=jnp.int32), (BATCH, SEQ))

    logits = pipeline_parallel_forward(packed_params, input_ids, position_ids,
                                       hidden_states=None)
    logits = jax.block_until_ready(logits)

    assert logits.shape == (BATCH, SEQ, VOCAB), logits.shape
    assert bool(jnp.all(jnp.isfinite(logits)))
    print("KERNEL_OK")
</pallas_src>

<mosaic_0001>
module attributes {stable_mosaic.version = 11 : i64} {
  func.func @_fused_forward_kernel(%arg0: i32, %arg1: memref<16x32xf32, #tpu.memory_space<vmem>>, %arg2: memref<16x32xf32, #tpu.memory_space<vmem>>, %arg3: memref<16x32xf32, #tpu.memory_space<vmem>>, %arg4: memref<32x32xf32, #tpu.memory_space<vmem>>, %arg5: memref<16x16xf32, #tpu.memory_space<vmem>>, %arg6: memref<2x1x32xf32, #tpu.memory_space<vmem>>, %arg7: memref<2x32x96xbf16, #tpu.memory_space<vmem>>, %arg8: memref<2x32x32xbf16, #tpu.memory_space<vmem>>, %arg9: memref<2x1x32xf32, #tpu.memory_space<vmem>>, %arg10: memref<2x32x128xbf16, #tpu.memory_space<vmem>>, %arg11: memref<2x64x32xbf16, #tpu.memory_space<vmem>>, %arg12: memref<1x32xf32, #tpu.memory_space<vmem>>, %arg13: memref<32x128xbf16, #tpu.memory_space<vmem>>, %arg14: memref<16x128xf32, #tpu.memory_space<vmem>>) attributes {dimension_semantics = [#tpu.dimension_semantics<arbitrary>], iteration_bounds = array<i64: 1>, scalar_prefetch = 0 : i64, scratch_operands = 0 : i64, tpu.core_type = #tpu.core_type<tc>, window_params = [{pipeline_mode = #tpu.pipeline_mode<synchronous>, transform_indices = @transform_0, window_bounds = array<i64: 16, 32>}, {pipeline_mode = #tpu.pipeline_mode<synchronous>, transform_indices = @transform_1, window_bounds = array<i64: 16, 32>}, {pipeline_mode = #tpu.pipeline_mode<synchronous>, transform_indices = @transform_2, window_bounds = array<i64: 16, 32>}, {pipeline_mode = #tpu.pipeline_mode<synchronous>, transform_indices = @transform_3, window_bounds = array<i64: 32, 32>}, {pipeline_mode = #tpu.pipeline_mode<synchronous>, transform_indices = @transform_4, window_bounds = array<i64: 16, 16>}, {pipeline_mode = #tpu.pipeline_mode<synchronous>, transform_indices = @transform_5, window_bounds = array<i64: 2, 1, 32>}, {pipeline_mode = #tpu.pipeline_mode<synchronous>, transform_indices = @transform_6, window_bounds = array<i64: 2, 32, 96>}, {pipeline_mode = #tpu.pipeline_mode<synchronous>, transform_indices = @transform_7, window_bounds = array<i64: 2, 32, 32>}, {pipeline_mode = #tpu.pipeline_mode<synchronous>, transform_indices = @transform_8, window_bounds = array<i64: 2, 1, 32>}, {pipeline_mode = #tpu.pipeline_mode<synchronous>, transform_indices = @transform_9, window_bounds = array<i64: 2, 32, 128>}, {pipeline_mode = #tpu.pipeline_mode<synchronous>, transform_indices = @transform_10, window_bounds = array<i64: 2, 64, 32>}, {pipeline_mode = #tpu.pipeline_mode<synchronous>, transform_indices = @transform_11, window_bounds = array<i64: 1, 32>}, {pipeline_mode = #tpu.pipeline_mode<synchronous>, transform_indices = @transform_12, window_bounds = array<i64: 32, 128>}, {pipeline_mode = #tpu.pipeline_mode<synchronous>, transform_indices = @transform_13, window_bounds = array<i64: 16, 128>}]} {
    %c0 = arith.constant 0 : index
    %c0_0 = arith.constant 0 : index
    %0 = vector.load %arg1[%c0, %c0_0] : memref<16x32xf32, #tpu.memory_space<vmem>>, vector<16x32xf32>
    %c0_1 = arith.constant 0 : index
    %c0_2 = arith.constant 0 : index
    %1 = vector.load %arg2[%c0_1, %c0_2] : memref<16x32xf32, #tpu.memory_space<vmem>>, vector<16x32xf32>
    %c0_3 = arith.constant 0 : index
    %c0_4 = arith.constant 0 : index
    %2 = vector.load %arg3[%c0_3, %c0_4] : memref<16x32xf32, #tpu.memory_space<vmem>>, vector<16x32xf32>
    %c0_5 = arith.constant 0 : index
    %c0_6 = arith.constant 0 : index
    %3 = vector.load %arg4[%c0_5, %c0_6] : memref<32x32xf32, #tpu.memory_space<vmem>>, vector<32x32xf32>
    %c0_7 = arith.constant 0 : index
    %c0_8 = arith.constant 0 : index
    %4 = vector.load %arg5[%c0_7, %c0_8] : memref<16x16xf32, #tpu.memory_space<vmem>>, vector<16x16xf32>
    %c0_9 = arith.constant 0 : index
    %c0_10 = arith.constant 0 : index
    %c0_11 = arith.constant 0 : index
    %5 = vector.load %arg6[%c0_9, %c0_10, %c0_11] : memref<2x1x32xf32, #tpu.memory_space<vmem>>, vector<1x1x32xf32>
    %6 = vector.shape_cast %5 : vector<1x1x32xf32> to vector<1x32xf32>
    %7 = arith.mulf %0, %0 : vector<16x32xf32>
    %cst = arith.constant dense<0.000000e+00> : vector<16xf32>
    %8 = vector.multi_reduction <add>, %7, %cst [1] : vector<16x32xf32> to vector<16xf32>
    %9 = vector.shape_cast %8 : vector<16xf32> to vector<16x1xf32>
    %cst_12 = arith.constant 3.200000e+01 : f32
    %10 = vector.broadcast %cst_12 : f32 to vector<16x1xf32>
    %11 = arith.divf %9, %10 : vector<16x1xf32>
    %cst_13 = arith.constant 9.99999997E-7 : f32
    %12 = vector.broadcast %cst_13 : f32 to vector<16x1xf32>
    %13 = arith.addf %11, %12 : vector<16x1xf32>
    %14 = math.rsqrt %13 : vector<16x1xf32>
    %15 = vector.broadcast %14 : vector<16x1xf32> to vector<16x32xf32>
    %16 = arith.mulf %0, %15 : vector<16x32xf32>
    %17 = vector.broadcast %6 : vector<1x32xf32> to vector<16x32xf32>
    %18 = arith.mulf %16, %17 : vector<16x32xf32>
    %19 = arith.truncf %18 : vector<16x32xf32> to vector<16x32xbf16>
    %c0_14 = arith.constant 0 : index
    %c0_15 = arith.constant 0 : index
    %c0_16 = arith.constant 0 : index
    %20 = vector.load %arg7[%c0_14, %c0_15, %c0_16] : memref<2x32x96xbf16, #tpu.memory_space<vmem>>, vector<1x32x96xbf16>
    %21 = vector.shape_cast %20 : vector<1x32x96xbf16> to vector<32x96xbf16>
    %cst_17 = arith.constant dense<0.000000e+00> : vector<16x96xf32>
    %22 = tpu.matmul %19, %21, %cst_17 {dimension_numbers = #tpu.dot_dimension_numbers<[1], [0], [0], [1], [0, 0, 1, 1], [], []>} : vector<16x32xbf16>, vector<32x96xbf16>, vector<16x96xf32> -> vector<16x96xf32>
    %23 = vector.extract_strided_slice %22 {offsets = [0, 0], sizes = [16, 32], strides = [1, 1]} : vector<16x96xf32> to vector<16x32xf32>
    %24 = vector.extract_strided_slice %22 {offsets = [0, 32], sizes = [16, 32], strides = [1, 1]} : vector<16x96xf32> to vector<16x32xf32>
    %25 = vector.extract_strided_slice %22 {offsets = [0, 64], sizes = [16, 32], strides = [1, 1]} : vector<16x96xf32> to vector<16x32xf32>
    %26 = arith.mulf %23, %1 : vector<16x32xf32>
    %cst_18 = arith.constant dense<0.000000e+00> : vector<16x32xf32>
    %27 = tpu.matmul %23, %3, %cst_18 {dimension_numbers = #tpu.dot_dimension_numbers<[1], [0], [0], [1], [0, 0, 1, 1], [], []>} : vector<16x32xf32>, vector<32x32xf32>, vector<16x32xf32> -> vector<16x32xf32>
    %28 = arith.mulf %27, %2 : vector<16x32xf32>
    %29 = arith.addf %26, %28 : vector<16x32xf32>
    %30 = arith.mulf %24, %1 : vector<16x32xf32>
    %cst_19 = arith.constant dense<0.000000e+00> : vector<16x32xf32>
    %31 = tpu.matmul %24, %3, %cst_19 {dimension_numbers = #tpu.dot_dimension_numbers<[1], [0], [0], [1], [0, 0, 1, 1], [], []>} : vector<16x32xf32>, vector<32x32xf32>, vector<16x32xf32> -> vector<16x32xf32>
    %32 = arith.mulf %31, %2 : vector<16x32xf32>
    %33 = arith.addf %30, %32 : vector<16x32xf32>
    %34 = arith.truncf %29 : vector<16x32xf32> to vector<16x32xbf16>
    %35 = arith.truncf %33 : vector<16x32xf32> to vector<16x32xbf16>
    %36 = arith.truncf %25 : vector<16x32xf32> to vector<16x32xbf16>
    %37 = vector.extract_strided_slice %34 {offsets = [0, 0], sizes = [16, 8], strides = [1, 1]} : vector<16x32xbf16> to vector<16x8xbf16>
    %38 = vector.extract_strided_slice %35 {offsets = [0, 0], sizes = [16, 8], strides = [1, 1]} : vector<16x32xbf16> to vector<16x8xbf16>
    %39 = vector.extract_strided_slice %36 {offsets = [0, 0], sizes = [16, 8], strides = [1, 1]} : vector<16x32xbf16> to vector<16x8xbf16>
    %cst_20 = arith.constant dense<0.000000e+00> : vector<16x16xf32>
    %40 = tpu.matmul %37, %38, %cst_20 {dimension_numbers = #tpu.dot_dimension_numbers<[1], [1], [0], [0], [0, 0, 1, 0], [], []>} : vector<16x8xbf16>, vector<16x8xbf16>, vector<16x16xf32> -> vector<16x16xf32>
    %cst_21 = arith.constant 0.353553385 : f32
    %41 = vector.broadcast %cst_21 : f32 to vector<16x16xf32>
    %42 = arith.mulf %40, %41 : vector<16x16xf32>
    %43 = arith.addf %42, %4 : vector<16x16xf32>
    %cst_22 = arith.constant dense<0xFF800000> : vector<16xf32>
    %44 = vector.multi_reduction <maximumf>, %43, %cst_22 [1] : vector<16x16xf32> to vector<16xf32>
    %45 = vector.shape_cast %44 : vector<16xf32> to vector<16x1xf32>
    %46 = vector.broadcast %45 : vector<16x1xf32> to vector<16x16xf32>
    %47 = arith.subf %43, %46 : vector<16x16xf32>
    %48 = math.exp %47 : vector<16x16xf32>
    %cst_23 = arith.constant dense<0.000000e+00> : vector<16xf32>
    %49 = vector.multi_reduction <add>, %48, %cst_23 [1] : vector<16x16xf32> to vector<16xf32>
    %50 = vector.shape_cast %49 : vector<16xf32> to vector<16x1xf32>
    %51 = tpu.reciprocal %50 {approx = true} : vector<16x1xf32> -> vector<16x1xf32>
    %52 = vector.broadcast %51 : vector<16x1xf32> to vector<16x16xf32>
    %53 = arith.mulf %48, %52 : vector<16x16xf32>
    %54 = arith.truncf %53 : vector<16x16xf32> to vector<16x16xbf16>
    %cst_24 = arith.constant dense<0.000000e+00> : vector<16x8xf32>
    %55 = tpu.matmul %54, %39, %cst_24 {dimension_numbers = #tpu.dot_dimension_numbers<[1], [0], [0], [1], [0, 0, 1, 1], [], []>} : vector<16x16xbf16>, vector<16x8xbf16>, vector<16x8xf32> -> vector<16x8xf32>
    %56 = vector.extract_strided_slice %34 {offsets = [0, 8], sizes = [16, 8], strides = [1, 1]} : vector<16x32xbf16> to vector<16x8xbf16>
    %57 = vector.extract_strided_slice %35 {offsets = [0, 8], sizes = [16, 8], strides = [1, 1]} : vector<16x32xbf16> to vector<16x8xbf16>
    %58 = vector.extract_strided_slice %36 {offsets = [0, 8], sizes = [16, 8], strides = [1, 1]} : vector<16x32xbf16> to vector<16x8xbf16>
    %cst_25 = arith.constant dense<0.000000e+00> : vector<16x16xf32>
    %59 = tpu.matmul %56, %57, %cst_25 {dimension_numbers = #tpu.dot_dimension_numbers<[1], [1], [0], [0], [0, 0, 1, 0], [], []>} : vector<16x8xbf16>, vector<16x8xbf16>, vector<16x16xf32> -> vector<16x16xf32>
    %cst_26 = arith.constant 0.353553385 : f32
    %60 = vector.broadcast %cst_26 : f32 to vector<16x16xf32>
    %61 = arith.mulf %59, %60 : vector<16x16xf32>
    %62 = arith.addf %61, %4 : vector<16x16xf32>
    %cst_27 = arith.constant dense<0xFF800000> : vector<16xf32>
    %63 = vector.multi_reduction <maximumf>, %62, %cst_27 [1] : vector<16x16xf32> to vector<16xf32>
    %64 = vector.shape_cast %63 : vector<16xf32> to vector<16x1xf32>
    %65 = vector.broadcast %64 : vector<16x1xf32> to vector<16x16xf32>
    %66 = arith.subf %62, %65 : vector<16x16xf32>
    %67 = math.exp %66 : vector<16x16xf32>
    %cst_28 = arith.constant dense<0.000000e+00> : vector<16xf32>
    %68 = vector.multi_reduction <add>, %67, %cst_28 [1] : vector<16x16xf32> to vector<16xf32>
    %69 = vector.shape_cast %68 : vector<16xf32> to vector<16x1xf32>
    %70 = tpu.reciprocal %69 {approx = true} : vector<16x1xf32> -> vector<16x1xf32>
    %71 = vector.broadcast %70 : vector<16x1xf32> to vector<16x16xf32>
    %72 = arith.mulf %67, %71 : vector<16x16xf32>
    %73 = arith.truncf %72 : vector<16x16xf32> to vector<16x16xbf16>
    %cst_29 = arith.constant dense<0.000000e+00> : vector<16x8xf32>
    %74 = tpu.matmul %73, %58, %cst_29 {dimension_numbers = #tpu.dot_dimension_numbers<[1], [0], [0], [1], [0, 0, 1, 1], [], []>} : vector<16x16xbf16>, vector<16x8xbf16>, vector<16x8xf32> -> vector<16x8xf32>
    %75 = vector.extract_strided_slice %34 {offsets = [0, 16], sizes = [16, 8], strides = [1, 1]} : vector<16x32xbf16> to vector<16x8xbf16>
    %76 = vector.extract_strided_slice %35 {offsets = [0, 16], sizes = [16, 8], strides = [1, 1]} : vector<16x32xbf16> to vector<16x8xbf16>
    %77 = vector.extract_strided_slice %36 {offsets = [0, 16], sizes = [16, 8], strides = [1, 1]} : vector<16x32xbf16> to vector<16x8xbf16>
    %cst_30 = arith.constant dense<0.000000e+00> : vector<16x16xf32>
    %78 = tpu.matmul %75, %76, %cst_30 {dimension_numbers = #tpu.dot_dimension_numbers<[1], [1], [0], [0], [0, 0, 1, 0], [], []>} : vector<16x8xbf16>, vector<16x8xbf16>, vector<16x16xf32> -> vector<16x16xf32>
    %cst_31 = arith.constant 0.353553385 : f32
    %79 = vector.broadcast %cst_31 : f32 to vector<16x16xf32>
    %80 = arith.mulf %78, %79 : vector<16x16xf32>
    %81 = arith.addf %80, %4 : vector<16x16xf32>
    %cst_32 = arith.constant dense<0xFF800000> : vector<16xf32>
    %82 = vector.multi_reduction <maximumf>, %81, %cst_32 [1] : vector<16x16xf32> to vector<16xf32>
    %83 = vector.shape_cast %82 : vector<16xf32> to vector<16x1xf32>
    %84 = vector.broadcast %83 : vector<16x1xf32> to vector<16x16xf32>
    %85 = arith.subf %81, %84 : vector<16x16xf32>
    %86 = math.exp %85 : vector<16x16xf32>
    %cst_33 = arith.constant dense<0.000000e+00> : vector<16xf32>
    %87 = vector.multi_reduction <add>, %86, %cst_33 [1] : vector<16x16xf32> to vector<16xf32>
    %88 = vector.shape_cast %87 : vector<16xf32> to vector<16x1xf32>
    %89 = tpu.reciprocal %88 {approx = true} : vector<16x1xf32> -> vector<16x1xf32>
    %90 = vector.broadcast %89 : vector<16x1xf32> to vector<16x16xf32>
    %91 = arith.mulf %86, %90 : vector<16x16xf32>
    %92 = arith.truncf %91 : vector<16x16xf32> to vector<16x16xbf16>
    %cst_34 = arith.constant dense<0.000000e+00> : vector<16x8xf32>
    %93 = tpu.matmul %92, %77, %cst_34 {dimension_numbers = #tpu.dot_dimension_numbers<[1], [0], [0], [1], [0, 0, 1, 1], [], []>} : vector<16x16xbf16>, vector<16x8xbf16>, vector<16x8xf32> -> vector<16x8xf32>
    %94 = vector.extract_strided_slice %34 {offsets = [0, 24], sizes = [16, 8], strides = [1, 1]} : vector<16x32xbf16> to vector<16x8xbf16>
    %95 = vector.extract_strided_slice %35 {offsets = [0, 24], sizes = [16, 8], strides = [1, 1]} : vector<16x32xbf16> to vector<16x8xbf16>
    %96 = vector.extract_strided_slice %36 {offsets = [0, 24], sizes = [16, 8], strides = [1, 1]} : vector<16x32xbf16> to vector<16x8xbf16>
    %cst_35 = arith.constant dense<0.000000e+00> : vector<16x16xf32>
    %97 = tpu.matmul %94, %95, %cst_35 {dimension_numbers = #tpu.dot_dimension_numbers<[1], [1], [0], [0], [0, 0, 1, 0], [], []>} : vector<16x8xbf16>, vector<16x8xbf16>, vector<16x16xf32> -> vector<16x16xf32>
    %cst_36 = arith.constant 0.353553385 : f32
    %98 = vector.broadcast %cst_36 : f32 to vector<16x16xf32>
    %99 = arith.mulf %97, %98 : vector<16x16xf32>
    %100 = arith.addf %99, %4 : vector<16x16xf32>
    %cst_37 = arith.constant dense<0xFF800000> : vector<16xf32>
    %101 = vector.multi_reduction <maximumf>, %100, %cst_37 [1] : vector<16x16xf32> to vector<16xf32>
    %102 = vector.shape_cast %101 : vector<16xf32> to vector<16x1xf32>
    %103 = vector.broadcast %102 : vector<16x1xf32> to vector<16x16xf32>
    %104 = arith.subf %100, %103 : vector<16x16xf32>
    %105 = math.exp %104 : vector<16x16xf32>
    %cst_38 = arith.constant dense<0.000000e+00> : vector<16xf32>
    %106 = vector.multi_reduction <add>, %105, %cst_38 [1] : vector<16x16xf32> to vector<16xf32>
    %107 = vector.shape_cast %106 : vector<16xf32> to vector<16x1xf32>
    %108 = tpu.reciprocal %107 {approx = true} : vector<16x1xf32> -> vector<16x1xf32>
    %109 = vector.broadcast %108 : vector<16x1xf32> to vector<16x16xf32>
    %110 = arith.mulf %105, %109 : vector<16x16xf32>
    %111 = arith.truncf %110 : vector<16x16xf32> to vector<16x16xbf16>
    %cst_39 = arith.constant dense<0.000000e+00> : vector<16x8xf32>
    %112 = tpu.matmul %111, %96, %cst_39 {dimension_numbers = #tpu.dot_dimension_numbers<[1], [0], [0], [1], [0, 0, 1, 1], [], []>} : vector<16x16xbf16>, vector<16x8xbf16>, vector<16x8xf32> -> vector<16x8xf32>
    %113 = tpu.concatenate %55, %74, %93, %112 in 1 : vector<16x8xf32>, vector<16x8xf32>, vector<16x8xf32>, vector<16x8xf32> -> vector<16x32xf32>
    %114 = arith.truncf %113 : vector<16x32xf32> to vector<16x32xbf16>
    %c0_40 = arith.constant 0 : index
    %c0_41 = arith.constant 0 : index
    %c0_42 = arith.constant 0 : index
    %115 = vector.load %arg8[%c0_40, %c0_41, %c0_42] : memref<2x32x32xbf16, #tpu.memory_space<vmem>>, vector<1x32x32xbf16>
    %116 = vector.shape_cast %115 : vector<1x32x32xbf16> to vector<32x32xbf16>
    %cst_43 = arith.constant dense<0.000000e+00> : vector<16x32xf32>
    %117 = tpu.matmul %114, %116, %cst_43 {dimension_numbers = #tpu.dot_dimension_numbers<[1], [0], [0], [1], [0, 0, 1, 1], [], []>} : vector<16x32xbf16>, vector<32x32xbf16>, vector<16x32xf32> -> vector<16x32xf32>
    %118 = arith.addf %0, %117 : vector<16x32xf32>
    %c0_44 = arith.constant 0 : index
    %c0_45 = arith.constant 0 : index
    %c0_46 = arith.constant 0 : index
    %119 = vector.load %arg9[%c0_44, %c0_45, %c0_46] : memref<2x1x32xf32, #tpu.memory_space<vmem>>, vector<1x1x32xf32>
    %120 = vector.shape_cast %119 : vector<1x1x32xf32> to vector<1x32xf32>
    %121 = arith.mulf %118, %118 : vector<16x32xf32>
    %cst_47 = arith.constant dense<0.000000e+00> : vector<16xf32>
    %122 = vector.multi_reduction <add>, %121, %cst_47 [1] : vector<16x32xf32> to vector<16xf32>
    %123 = vector.shape_cast %122 : vector<16xf32> to vector<16x1xf32>
    %cst_48 = arith.constant 3.200000e+01 : f32
    %124 = vector.broadcast %cst_48 : f32 to vector<16x1xf32>
    %125 = arith.divf %123, %124 : vector<16x1xf32>
    %cst_49 = arith.constant 9.99999997E-7 : f32
    %126 = vector.broadcast %cst_49 : f32 to vector<16x1xf32>
    %127 = arith.addf %125, %126 : vector<16x1xf32>
    %128 = math.rsqrt %127 : vector<16x1xf32>
    %129 = vector.broadcast %128 : vector<16x1xf32> to vector<16x32xf32>
    %130 = arith.mulf %118, %129 : vector<16x32xf32>
    %131 = vector.broadcast %120 : vector<1x32xf32> to vector<16x32xf32>
    %132 = arith.mulf %130, %131 : vector<16x32xf32>
    %133 = arith.truncf %132 : vector<16x32xf32> to vector<16x32xbf16>
    %c0_50 = arith.constant 0 : index
    %c0_51 = arith.constant 0 : index
    %c0_52 = arith.constant 0 : index
    %134 = vector.load %arg10[%c0_50, %c0_51, %c0_52] : memref<2x32x128xbf16, #tpu.memory_space<vmem>>, vector<1x32x128xbf16>
    %135 = vector.shape_cast %134 : vector<1x32x128xbf16> to vector<32x128xbf16>
    %cst_53 = arith.constant dense<0.000000e+00> : vector<16x128xf32>
    %136 = tpu.matmul %133, %135, %cst_53 {dimension_numbers = #tpu.dot_dimension_numbers<[1], [0], [0], [1], [0, 0, 1, 1], [], []>} : vector<16x32xbf16>, vector<32x128xbf16>, vector<16x128xf32> -> vector<16x128xf32>
    %137 = vector.extract_strided_slice %136 {offsets = [0, 0], sizes = [16, 64], strides = [1, 1]} : vector<16x128xf32> to vector<16x64xf32>
    %138 = vector.extract_strided_slice %136 {offsets = [0, 64], sizes = [16, 64], strides = [1, 1]} : vector<16x128xf32> to vector<16x64xf32>
    %cst_54 = arith.constant 0.000000e+00 : f32
    %139 = vector.broadcast %cst_54 : f32 to vector<16x64xf32>
    %140 = arith.subf %139, %137 : vector<16x64xf32>
    %141 = math.exp %140 : vector<16x64xf32>
    %cst_55 = arith.constant 1.000000e+00 : f32
    %142 = vector.broadcast %cst_55 : f32 to vector<16x64xf32>
    %143 = arith.addf %142, %141 : vector<16x64xf32>
    %cst_56 = arith.constant 1.000000e+00 : f32
    %144 = vector.broadcast %cst_56 : f32 to vector<16x64xf32>
    %145 = arith.divf %144, %143 : vector<16x64xf32>
    %146 = arith.mulf %137, %145 : vector<16x64xf32>
    %147 = arith.mulf %146, %138 : vector<16x64xf32>
    %148 = arith.truncf %147 : vector<16x64xf32> to vector<16x64xbf16>
    %c0_57 = arith.constant 0 : index
    %c0_58 = arith.constant 0 : index
    %c0_59 = arith.constant 0 : index
    %149 = vector.load %arg11[%c0_57, %c0_58, %c0_59] : memref<2x64x32xbf16, #tpu.memory_space<vmem>>, vector<1x64x32xbf16>
    %150 = vector.shape_cast %149 : vector<1x64x32xbf16> to vector<64x32xbf16>
    %cst_60 = arith.constant dense<0.000000e+00> : vector<16x32xf32>
    %151 = tpu.matmul %148, %150, %cst_60 {dimension_numbers = #tpu.dot_dimension_numbers<[1], [0], [0], [1], [0, 0, 1, 1], [], []>} : vector<16x64xbf16>, vector<64x32xbf16>, vector<16x32xf32> -> vector<16x32xf32>
    %152 = arith.addf %118, %151 : vector<16x32xf32>
    %c1 = arith.constant 1 : index
    %c0_61 = arith.constant 0 : index
    %c0_62 = arith.constant 0 : index
    %153 = vector.load %arg6[%c1, %c0_61, %c0_62] : memref<2x1x32xf32, #tpu.memory_space<vmem>>, vector<1x1x32xf32>
    %154 = vector.shape_cast %153 : vector<1x1x32xf32> to vector<1x32xf32>
    %155 = arith.mulf %152, %152 : vector<16x32xf32>
    %cst_63 = arith.constant dense<0.000000e+00> : vector<16xf32>
    %156 = vector.multi_reduction <add>, %155, %cst_63 [1] : vector<16x32xf32> to vector<16xf32>
    %157 = vector.shape_cast %156 : vector<16xf32> to vector<16x1xf32>
    %cst_64 = arith.constant 3.200000e+01 : f32
    %158 = vector.broadcast %cst_64 : f32 to vector<16x1xf32>
    %159 = arith.divf %157, %158 : vector<16x1xf32>
    %cst_65 = arith.constant 9.99999997E-7 : f32
    %160 = vector.broadcast %cst_65 : f32 to vector<16x1xf32>
    %161 = arith.addf %159, %160 : vector<16x1xf32>
    %162 = math.rsqrt %161 : vector<16x1xf32>
    %163 = vector.broadcast %162 : vector<16x1xf32> to vector<16x32xf32>
    %164 = arith.mulf %152, %163 : vector<16x32xf32>
    %165 = vector.broadcast %154 : vector<1x32xf32> to vector<16x32xf32>
    %166 = arith.mulf %164, %165 : vector<16x32xf32>
    %167 = arith.truncf %166 : vector<16x32xf32> to vector<16x32xbf16>
    %c1_66 = arith.constant 1 : index
    %c0_67 = arith.constant 0 : index
    %c0_68 = arith.constant 0 : index
    %168 = vector.load %arg7[%c1_66, %c0_67, %c0_68] : memref<2x32x96xbf16, #tpu.memory_space<vmem>>, vector<1x32x96xbf16>
    %169 = vector.shape_cast %168 : vector<1x32x96xbf16> to vector<32x96xbf16>
    %cst_69 = arith.constant dense<0.000000e+00> : vector<16x96xf32>
    %170 = tpu.matmul %167, %169, %cst_69 {dimension_numbers = #tpu.dot_dimension_numbers<[1], [0], [0], [1], [0, 0, 1, 1], [], []>} : vector<16x32xbf16>, vector<32x96xbf16>, vector<16x96xf32> -> vector<16x96xf32>
    %171 = vector.extract_strided_slice %170 {offsets = [0, 0], sizes = [16, 32], strides = [1, 1]} : vector<16x96xf32> to vector<16x32xf32>
    %172 = vector.extract_strided_slice %170 {offsets = [0, 32], sizes = [16, 32], strides = [1, 1]} : vector<16x96xf32> to vector<16x32xf32>
    %173 = vector.extract_strided_slice %170 {offsets = [0, 64], sizes = [16, 32], strides = [1, 1]} : vector<16x96xf32> to vector<16x32xf32>
    %174 = arith.mulf %171, %1 : vector<16x32xf32>
    %cst_70 = arith.constant dense<0.000000e+00> : vector<16x32xf32>
    %175 = tpu.matmul %171, %3, %cst_70 {dimension_numbers = #tpu.dot_dimension_numbers<[1], [0], [0], [1], [0, 0, 1, 1], [], []>} : vector<16x32xf32>, vector<32x32xf32>, vector<16x32xf32> -> vector<16x32xf32>
    %176 = arith.mulf %175, %2 : vector<16x32xf32>
    %177 = arith.addf %174, %176 : vector<16x32xf32>
    %178 = arith.mulf %172, %1 : vector<16x32xf32>
    %cst_71 = arith.constant dense<0.000000e+00> : vector<16x32xf32>
    %179 = tpu.matmul %172, %3, %cst_71 {dimension_numbers = #tpu.dot_dimension_numbers<[1], [0], [0], [1], [0, 0, 1, 1], [], []>} : vector<16x32xf32>, vector<32x32xf32>, vector<16x32xf32> -> vector<16x32xf32>
    %180 = arith.mulf %179, %2 : vector<16x32xf32>
    %181 = arith.addf %178, %180 : vector<16x32xf32>
    %182 = arith.truncf %177 : vector<16x32xf32> to vector<16x32xbf16>
    %183 = arith.truncf %181 : vector<16x32xf32> to vector<16x32xbf16>
    %184 = arith.truncf %173 : vector<16x32xf32> to vector<16x32xbf16>
    %185 = vector.extract_strided_slice %182 {offsets = [0, 0], sizes = [16, 8], strides = [1, 1]} : vector<16x32xbf16> to vector<16x8xbf16>
    %186 = vector.extract_strided_slice %183 {offsets = [0, 0], sizes = [16, 8], strides = [1, 1]} : vector<16x32xbf16> to vector<16x8xbf16>
    %187 = vector.extract_strided_slice %184 {offsets = [0, 0], sizes = [16, 8], strides = [1, 1]} : vector<16x32xbf16> to vector<16x8xbf16>
    %cst_72 = arith.constant dense<0.000000e+00> : vector<16x16xf32>
    %188 = tpu.matmul %185, %186, %cst_72 {dimension_numbers = #tpu.dot_dimension_numbers<[1], [1], [0], [0], [0, 0, 1, 0], [], []>} : vector<16x8xbf16>, vector<16x8xbf16>, vector<16x16xf32> -> vector<16x16xf32>
    %cst_73 = arith.constant 0.353553385 : f32
    %189 = vector.broadcast %cst_73 : f32 to vector<16x16xf32>
    %190 = arith.mulf %188, %189 : vector<16x16xf32>
    %191 = arith.addf %190, %4 : vector<16x16xf32>
    %cst_74 = arith.constant dense<0xFF800000> : vector<16xf32>
    %192 = vector.multi_reduction <maximumf>, %191, %cst_74 [1] : vector<16x16xf32> to vector<16xf32>
    %193 = vector.shape_cast %192 : vector<16xf32> to vector<16x1xf32>
    %194 = vector.broadcast %193 : vector<16x1xf32> to vector<16x16xf32>
    %195 = arith.subf %191, %194 : vector<16x16xf32>
    %196 = math.exp %195 : vector<16x16xf32>
    %cst_75 = arith.constant dense<0.000000e+00> : vector<16xf32>
    %197 = vector.multi_reduction <add>, %196, %cst_75 [1] : vector<16x16xf32> to vector<16xf32>
    %198 = vector.shape_cast %197 : vector<16xf32> to vector<16x1xf32>
    %199 = tpu.reciprocal %198 {approx = true} : vector<16x1xf32> -> vector<16x1xf32>
    %200 = vector.broadcast %199 : vector<16x1xf32> to vector<16x16xf32>
    %201 = arith.mulf %196, %200 : vector<16x16xf32>
    %202 = arith.truncf %201 : vector<16x16xf32> to vector<16x16xbf16>
    %cst_76 = arith.constant dense<0.000000e+00> : vector<16x8xf32>
    %203 = tpu.matmul %202, %187, %cst_76 {dimension_numbers = #tpu.dot_dimension_numbers<[1], [0], [0], [1], [0, 0, 1, 1], [], []>} : vector<16x16xbf16>, vector<16x8xbf16>, vector<16x8xf32> -> vector<16x8xf32>
    %204 = vector.extract_strided_slice %182 {offsets = [0, 8], sizes = [16, 8], strides = [1, 1]} : vector<16x32xbf16> to vector<16x8xbf16>
    %205 = vector.extract_strided_slice %183 {offsets = [0, 8], sizes = [16, 8], strides = [1, 1]} : vector<16x32xbf16> to vector<16x8xbf16>
    %206 = vector.extract_strided_slice %184 {offsets = [0, 8], sizes = [16, 8], strides = [1, 1]} : vector<16x32xbf16> to vector<16x8xbf16>
    %cst_77 = arith.constant dense<0.000000e+00> : vector<16x16xf32>
    %207 = tpu.matmul %204, %205, %cst_77 {dimension_numbers = #tpu.dot_dimension_numbers<[1], [1], [0], [0], [0, 0, 1, 0], [], []>} : vector<16x8xbf16>, vector<16x8xbf16>, vector<16x16xf32> -> vector<16x16xf32>
    %cst_78 = arith.constant 0.353553385 : f32
    %208 = vector.broadcast %cst_78 : f32 to vector<16x16xf32>
    %209 = arith.mulf %207, %208 : vector<16x16xf32>
    %210 = arith.addf %209, %4 : vector<16x16xf32>
    %cst_79 = arith.constant dense<0xFF800000> : vector<16xf32>
    %211 = vector.multi_reduction <maximumf>, %210, %cst_79 [1] : vector<16x16xf32> to vector<16xf32>
    %212 = vector.shape_cast %211 : vector<16xf32> to vector<16x1xf32>
    %213 = vector.broadcast %212 : vector<16x1xf32> to vector<16x16xf32>
    %214 = arith.subf %210, %213 : vector<16x16xf32>
    %215 = math.exp %214 : vector<16x16xf32>
    %cst_80 = arith.constant dense<0.000000e+00> : vector<16xf32>
    %216 = vector.multi_reduction <add>, %215, %cst_80 [1] : vector<16x16xf32> to vector<16xf32>
    %217 = vector.shape_cast %216 : vector<16xf32> to vector<16x1xf32>
    %218 = tpu.reciprocal %217 {approx = true} : vector<16x1xf32> -> vector<16x1xf32>
    %219 = vector.broadcast %218 : vector<16x1xf32> to vector<16x16xf32>
    %220 = arith.mulf %215, %219 : vector<16x16xf32>
    %221 = arith.truncf %220 : vector<16x16xf32> to vector<16x16xbf16>
    %cst_81 = arith.constant dense<0.000000e+00> : vector<16x8xf32>
    %222 = tpu.matmul %221, %206, %cst_81 {dimension_numbers = #tpu.dot_dimension_numbers<[1], [0], [0], [1], [0, 0, 1, 1], [], []>} : vector<16x16xbf16>, vector<16x8xbf16>, vector<16x8xf32> -> vector<16x8xf32>
    %223 = vector.extract_strided_slice %182 {offsets = [0, 16], sizes = [16, 8], strides = [1, 1]} : vector<16x32xbf16> to vector<16x8xbf16>
    %224 = vector.extract_strided_slice %183 {offsets = [0, 16], sizes = [16, 8], strides = [1, 1]} : vector<16x32xbf16> to vector<16x8xbf16>
    %225 = vector.extract_strided_slice %184 {offsets = [0, 16], sizes = [16, 8], strides = [1, 1]} : vector<16x32xbf16> to vector<16x8xbf16>
    %cst_82 = arith.constant dense<0.000000e+00> : vector<16x16xf32>
    %226 = tpu.matmul %223, %224, %cst_82 {dimension_numbers = #tpu.dot_dimension_numbers<[1], [1], [0], [0], [0, 0, 1, 0], [], []>} : vector<16x8xbf16>, vector<16x8xbf16>, vector<16x16xf32> -> vector<16x16xf32>
    %cst_83 = arith.constant 0.353553385 : f32
    %227 = vector.broadcast %cst_83 : f32 to vector<16x16xf32>
    %228 = arith.mulf %226, %227 : vector<16x16xf32>
    %229 = arith.addf %228, %4 : vector<16x16xf32>
    %cst_84 = arith.constant dense<0xFF800000> : vector<16xf32>
    %230 = vector.multi_reduction <maximumf>, %229, %cst_84 [1] : vector<16x16xf32> to vector<16xf32>
    %231 = vector.shape_cast %230 : vector<16xf32> to vector<16x1xf32>
    %232 = vector.broadcast %231 : vector<16x1xf32> to vector<16x16xf32>
    %233 = arith.subf %229, %232 : vector<16x16xf32>
    %234 = math.exp %233 : vector<16x16xf32>
    %cst_85 = arith.constant dense<0.000000e+00> : vector<16xf32>
    %235 = vector.multi_reduction <add>, %234, %cst_85 [1] : vector<16x16xf32> to vector<16xf32>
    %236 = vector.shape_cast %235 : vector<16xf32> to vector<16x1xf32>
    %237 = tpu.reciprocal %236 {approx = true} : vector<16x1xf32> -> vector<16x1xf32>
    %238 = vector.broadcast %237 : vector<16x1xf32> to vector<16x16xf32>
    %239 = arith.mulf %234, %238 : vector<16x16xf32>
    %240 = arith.truncf %239 : vector<16x16xf32> to vector<16x16xbf16>
    %cst_86 = arith.constant dense<0.000000e+00> : vector<16x8xf32>
    %241 = tpu.matmul %240, %225, %cst_86 {dimension_numbers = #tpu.dot_dimension_numbers<[1], [0], [0], [1], [0, 0, 1, 1], [], []>} : vector<16x16xbf16>, vector<16x8xbf16>, vector<16x8xf32> -> vector<16x8xf32>
    %242 = vector.extract_strided_slice %182 {offsets = [0, 24], sizes = [16, 8], strides = [1, 1]} : vector<16x32xbf16> to vector<16x8xbf16>
    %243 = vector.extract_strided_slice %183 {offsets = [0, 24], sizes = [16, 8], strides = [1, 1]} : vector<16x32xbf16> to vector<16x8xbf16>
    %244 = vector.extract_strided_slice %184 {offsets = [0, 24], sizes = [16, 8], strides = [1, 1]} : vector<16x32xbf16> to vector<16x8xbf16>
    %cst_87 = arith.constant dense<0.000000e+00> : vector<16x16xf32>
    %245 = tpu.matmul %242, %243, %cst_87 {dimension_numbers = #tpu.dot_dimension_numbers<[1], [1], [0], [0], [0, 0, 1, 0], [], []>} : vector<16x8xbf16>, vector<16x8xbf16>, vector<16x16xf32> -> vector<16x16xf32>
    %cst_88 = arith.constant 0.353553385 : f32
    %246 = vector.broadcast %cst_88 : f32 to vector<16x16xf32>
    %247 = arith.mulf %245, %246 : vector<16x16xf32>
    %248 = arith.addf %247, %4 : vector<16x16xf32>
    %cst_89 = arith.constant dense<0xFF800000> : vector<16xf32>
    %249 = vector.multi_reduction <maximumf>, %248, %cst_89 [1] : vector<16x16xf32> to vector<16xf32>
    %250 = vector.shape_cast %249 : vector<16xf32> to vector<16x1xf32>
    %251 = vector.broadcast %250 : vector<16x1xf32> to vector<16x16xf32>
    %252 = arith.subf %248, %251 : vector<16x16xf32>
    %253 = math.exp %252 : vector<16x16xf32>
    %cst_90 = arith.constant dense<0.000000e+00> : vector<16xf32>
    %254 = vector.multi_reduction <add>, %253, %cst_90 [1] : vector<16x16xf32> to vector<16xf32>
    %255 = vector.shape_cast %254 : vector<16xf32> to vector<16x1xf32>
    %256 = tpu.reciprocal %255 {approx = true} : vector<16x1xf32> -> vector<16x1xf32>
    %257 = vector.broadcast %256 : vector<16x1xf32> to vector<16x16xf32>
    %258 = arith.mulf %253, %257 : vector<16x16xf32>
    %259 = arith.truncf %258 : vector<16x16xf32> to vector<16x16xbf16>
    %cst_91 = arith.constant dense<0.000000e+00> : vector<16x8xf32>
    %260 = tpu.matmul %259, %244, %cst_91 {dimension_numbers = #tpu.dot_dimension_numbers<[1], [0], [0], [1], [0, 0, 1, 1], [], []>} : vector<16x16xbf16>, vector<16x8xbf16>, vector<16x8xf32> -> vector<16x8xf32>
    %261 = tpu.concatenate %203, %222, %241, %260 in 1 : vector<16x8xf32>, vector<16x8xf32>, vector<16x8xf32>, vector<16x8xf32> -> vector<16x32xf32>
    %262 = arith.truncf %261 : vector<16x32xf32> to vector<16x32xbf16>
    %c1_92 = arith.constant 1 : index
    %c0_93 = arith.constant 0 : index
    %c0_94 = arith.constant 0 : index
    %263 = vector.load %arg8[%c1_92, %c0_93, %c0_94] : memref<2x32x32xbf16, #tpu.memory_space<vmem>>, vector<1x32x32xbf16>
    %264 = vector.shape_cast %263 : vector<1x32x32xbf16> to vector<32x32xbf16>
    %cst_95 = arith.constant dense<0.000000e+00> : vector<16x32xf32>
    %265 = tpu.matmul %262, %264, %cst_95 {dimension_numbers = #tpu.dot_dimension_numbers<[1], [0], [0], [1], [0, 0, 1, 1], [], []>} : vector<16x32xbf16>, vector<32x32xbf16>, vector<16x32xf32> -> vector<16x32xf32>
    %266 = arith.addf %152, %265 : vector<16x32xf32>
    %c1_96 = arith.constant 1 : index
    %c0_97 = arith.constant 0 : index
    %c0_98 = arith.constant 0 : index
    %267 = vector.load %arg9[%c1_96, %c0_97, %c0_98] : memref<2x1x32xf32, #tpu.memory_space<vmem>>, vector<1x1x32xf32>
    %268 = vector.shape_cast %267 : vector<1x1x32xf32> to vector<1x32xf32>
    %269 = arith.mulf %266, %266 : vector<16x32xf32>
    %cst_99 = arith.constant dense<0.000000e+00> : vector<16xf32>
    %270 = vector.multi_reduction <add>, %269, %cst_99 [1] : vector<16x32xf32> to vector<16xf32>
    %271 = vector.shape_cast %270 : vector<16xf32> to vector<16x1xf32>
    %cst_100 = arith.constant 3.200000e+01 : f32
    %272 = vector.broadcast %cst_100 : f32 to vector<16x1xf32>
    %273 = arith.divf %271, %272 : vector<16x1xf32>
    %cst_101 = arith.constant 9.99999997E-7 : f32
    %274 = vector.broadcast %cst_101 : f32 to vector<16x1xf32>
    %275 = arith.addf %273, %274 : vector<16x1xf32>
    %276 = math.rsqrt %275 : vector<16x1xf32>
    %277 = vector.broadcast %276 : vector<16x1xf32> to vector<16x32xf32>
    %278 = arith.mulf %266, %277 : vector<16x32xf32>
    %279 = vector.broadcast %268 : vector<1x32xf32> to vector<16x32xf32>
    %280 = arith.mulf %278, %279 : vector<16x32xf32>
    %281 = arith.truncf %280 : vector<16x32xf32> to vector<16x32xbf16>
    %c1_102 = arith.constant 1 : index
    %c0_103 = arith.constant 0 : index
    %c0_104 = arith.constant 0 : index
    %282 = vector.load %arg10[%c1_102, %c0_103, %c0_104] : memref<2x32x128xbf16, #tpu.memory_space<vmem>>, vector<1x32x128xbf16>
    %283 = vector.shape_cast %282 : vector<1x32x128xbf16> to vector<32x128xbf16>
    %cst_105 = arith.constant dense<0.000000e+00> : vector<16x128xf32>
    %284 = tpu.matmul %281, %283, %cst_105 {dimension_numbers = #tpu.dot_dimension_numbers<[1], [0], [0], [1], [0, 0, 1, 1], [], []>} : vector<16x32xbf16>, vector<32x128xbf16>, vector<16x128xf32> -> vector<16x128xf32>
    %285 = vector.extract_strided_slice %284 {offsets = [0, 0], sizes = [16, 64], strides = [1, 1]} : vector<16x128xf32> to vector<16x64xf32>
    %286 = vector.extract_strided_slice %284 {offsets = [0, 64], sizes = [16, 64], strides = [1, 1]} : vector<16x128xf32> to vector<16x64xf32>
    %cst_106 = arith.constant 0.000000e+00 : f32
    %287 = vector.broadcast %cst_106 : f32 to vector<16x64xf32>
    %288 = arith.subf %287, %285 : vector<16x64xf32>
    %289 = math.exp %288 : vector<16x64xf32>
    %cst_107 = arith.constant 1.000000e+00 : f32
    %290 = vector.broadcast %cst_107 : f32 to vector<16x64xf32>
    %291 = arith.addf %290, %289 : vector<16x64xf32>
    %cst_108 = arith.constant 1.000000e+00 : f32
    %292 = vector.broadcast %cst_108 : f32 to vector<16x64xf32>
    %293 = arith.divf %292, %291 : vector<16x64xf32>
    %294 = arith.mulf %285, %293 : vector<16x64xf32>
    %295 = arith.mulf %294, %286 : vector<16x64xf32>
    %296 = arith.truncf %295 : vector<16x64xf32> to vector<16x64xbf16>
    %c1_109 = arith.constant 1 : index
    %c0_110 = arith.constant 0 : index
    %c0_111 = arith.constant 0 : index
    %297 = vector.load %arg11[%c1_109, %c0_110, %c0_111] : memref<2x64x32xbf16, #tpu.memory_space<vmem>>, vector<1x64x32xbf16>
    %298 = vector.shape_cast %297 : vector<1x64x32xbf16> to vector<64x32xbf16>
    %cst_112 = arith.constant dense<0.000000e+00> : vector<16x32xf32>
    %299 = tpu.matmul %296, %298, %cst_112 {dimension_numbers = #tpu.dot_dimension_numbers<[1], [0], [0], [1], [0, 0, 1, 1], [], []>} : vector<16x64xbf16>, vector<64x32xbf16>, vector<16x32xf32> -> vector<16x32xf32>
    %300 = arith.addf %266, %299 : vector<16x32xf32>
    %c0_113 = arith.constant 0 : index
    %c0_114 = arith.constant 0 : index
    %301 = vector.load %arg12[%c0_113, %c0_114] : memref<1x32xf32, #tpu.memory_space<vmem>>, vector<1x32xf32>
    %302 = arith.mulf %300, %300 : vector<16x32xf32>
    %cst_115 = arith.constant dense<0.000000e+00> : vector<16xf32>
    %303 = vector.multi_reduction <add>, %302, %cst_115 [1] : vector<16x32xf32> to vector<16xf32>
    %304 = vector.shape_cast %303 : vector<16xf32> to vector<16x1xf32>
    %cst_116 = arith.constant 3.200000e+01 : f32
    %305 = vector.broadcast %cst_116 : f32 to vector<16x1xf32>
    %306 = arith.divf %304, %305 : vector<16x1xf32>
    %cst_117 = arith.constant 9.99999997E-7 : f32
    %307 = vector.broadcast %cst_117 : f32 to vector<16x1xf32>
    %308 = arith.addf %306, %307 : vector<16x1xf32>
    %309 = math.rsqrt %308 : vector<16x1xf32>
    %310 = vector.broadcast %309 : vector<16x1xf32> to vector<16x32xf32>
    %311 = arith.mulf %300, %310 : vector<16x32xf32>
    %312 = vector.broadcast %301 : vector<1x32xf32> to vector<16x32xf32>
    %313 = arith.mulf %311, %312 : vector<16x32xf32>
    %314 = arith.truncf %313 : vector<16x32xf32> to vector<16x32xbf16>
    %c0_118 = arith.constant 0 : index
    %c0_119 = arith.constant 0 : index
    %315 = vector.load %arg13[%c0_118, %c0_119] : memref<32x128xbf16, #tpu.memory_space<vmem>>, vector<32x128xbf16>
    %cst_120 = arith.constant dense<0.000000e+00> : vector<16x128xf32>
    %316 = tpu.matmul %314, %315, %cst_120 {dimension_numbers = #tpu.dot_dimension_numbers<[1], [0], [0], [1], [0, 0, 1, 1], [], []>} : vector<16x32xbf16>, vector<32x128xbf16>, vector<16x128xf32> -> vector<16x128xf32>
    %c0_121 = arith.constant 0 : index
    %c0_122 = arith.constant 0 : index
    %317 = vector.load %arg14[%c0_121, %c0_122] : memref<16x128xf32, #tpu.memory_space<vmem>>, vector<16x128xf32>
    tpu.vector_store %arg14[%c0_121, %c0_122], %316 {strides = array<i32>} : memref<16x128xf32, #tpu.memory_space<vmem>>, vector<16x128xf32>,
    return
  }
  func.func @transform_0(%arg0: i32) -> (i32, i32) {
    %c0_i32 = arith.constant 0 : i32
    %c0_i32_0 = arith.constant 0 : i32
    %c0_i32_1 = arith.constant 0 : i32
    return %c0_i32, %c0_i32_0 : i32, i32
  }
  func.func @transform_1(%arg0: i32) -> (i32, i32) {
    %c0_i32 = arith.constant 0 : i32
    %c0_i32_0 = arith.constant 0 : i32
    %c0_i32_1 = arith.constant 0 : i32
    return %c0_i32, %c0_i32_0 : i32, i32
  }
  func.func @transform_2(%arg0: i32) -> (i32, i32) {
    %c0_i32 = arith.constant 0 : i32
    %c0_i32_0 = arith.constant 0 : i32
    %c0_i32_1 = arith.constant 0 : i32
    return %c0_i32, %c0_i32_0 : i32, i32
  }
  func.func @transform_3(%arg0: i32) -> (i32, i32) {
    %c0_i32 = arith.constant 0 : i32
    %c0_i32_0 = arith.constant 0 : i32
    %c0_i32_1 = arith.constant 0 : i32
    return %c0_i32, %c0_i32_0 : i32, i32
  }
  func.func @transform_4(%arg0: i32) -> (i32, i32) {
    %c0_i32 = arith.constant 0 : i32
    %c0_i32_0 = arith.constant 0 : i32
    %c0_i32_1 = arith.constant 0 : i32
    return %c0_i32, %c0_i32_0 : i32, i32
  }
  func.func @transform_5(%arg0: i32) -> (i32, i32, i32) {
    %c0_i32 = arith.constant 0 : i32
    %c0_i32_0 = arith.constant 0 : i32
    %c0_i32_1 = arith.constant 0 : i32
    %c0_i32_2 = arith.constant 0 : i32
    return %c0_i32, %c0_i32_0, %c0_i32_1 : i32, i32, i32
  }
  func.func @transform_6(%arg0: i32) -> (i32, i32, i32) {
    %c0_i32 = arith.constant 0 : i32
    %c0_i32_0 = arith.constant 0 : i32
    %c0_i32_1 = arith.constant 0 : i32
    %c0_i32_2 = arith.constant 0 : i32
    return %c0_i32, %c0_i32_0, %c0_i32_1 : i32, i32, i32
  }
  func.func @transform_7(%arg0: i32) -> (i32, i32, i32) {
    %c0_i32 = arith.constant 0 : i32
    %c0_i32_0 = arith.constant 0 : i32
    %c0_i32_1 = arith.constant 0 : i32
    %c0_i32_2 = arith.constant 0 : i32
    return %c0_i32, %c0_i32_0, %c0_i32_1 : i32, i32, i32
  }
  func.func @transform_8(%arg0: i32) -> (i32, i32, i32) {
    %c0_i32 = arith.constant 0 : i32
    %c0_i32_0 = arith.constant 0 : i32
    %c0_i32_1 = arith.constant 0 : i32
    %c0_i32_2 = arith.constant 0 : i32
    return %c0_i32, %c0_i32_0, %c0_i32_1 : i32, i32, i32
  }
  func.func @transform_9(%arg0: i32) -> (i32, i32, i32) {
    %c0_i32 = arith.constant 0 : i32
    %c0_i32_0 = arith.constant 0 : i32
    %c0_i32_1 = arith.constant 0 : i32
    %c0_i32_2 = arith.constant 0 : i32
    return %c0_i32, %c0_i32_0, %c0_i32_1 : i32, i32, i32
  }
  func.func @transform_10(%arg0: i32) -> (i32, i32, i32) {
    %c0_i32 = arith.constant 0 : i32
    %c0_i32_0 = arith.constant 0 : i32
    %c0_i32_1 = arith.constant 0 : i32
    %c0_i32_2 = arith.constant 0 : i32
    return %c0_i32, %c0_i32_0, %c0_i32_1 : i32, i32, i32
  }
  func.func @transform_11(%arg0: i32) -> (i32, i32) {
    %c0_i32 = arith.constant 0 : i32
    %c0_i32_0 = arith.constant 0 : i32
    %c0_i32_1 = arith.constant 0 : i32
    return %c0_i32, %c0_i32_0 : i32, i32
  }
  func.func @transform_12(%arg0: i32) -> (i32, i32) {
    %c0_i32 = arith.constant 0 : i32
    %c0_i32_0 = arith.constant 0 : i32
    %c0_i32_1 = arith.constant 0 : i32
    return %c0_i32, %c0_i32_0 : i32, i32
  }
  func.func @transform_13(%arg0: i32) -> (i32, i32) {
    %c0_i32 = arith.constant 0 : i32
    %c0_i32_0 = arith.constant 0 : i32
    %c0_i32_1 = arith.constant 0 : i32
    return %c0_i32, %c0_i32_0 : i32, i32
  }
}

</mosaic_0001>

<llo_original>
// kernel: tpu_custom_call.1
$region0: #{tpu_custom_call.1}
  #allocation0 [shape = 'u32[]', space=smem, size = 0x4, offset = 0x4, fixed_abs, tag = 'smem constant byte address 0x4 - core index']
  #allocation1 [shape = 'u32[72,128]{1,0:T(1,128)}', space=vmem, size = 0x9000, scoped, tag = 'internal scratch']
  %s0 = inlined_call_operand.hbm [shape: f32[16,32], index: 0, kind: input, shape index: {}]
  %s1 = inlined_call_operand.hbm [shape: f32[16,32], index: 1, kind: input, shape index: {}]
  %s2 = inlined_call_operand.hbm [shape: f32[16,32], index: 2, kind: input, shape index: {}]
  %s3 = inlined_call_operand.vmem [shape: f32[32,32], index: 3, kind: input, shape index: {}]
  %s4 = inlined_call_operand.hbm [shape: f32[16,16], index: 4, kind: input, shape index: {}]
  %s5 = inlined_call_operand.vmem [shape: f32[2,1,32], index: 5, kind: input, shape index: {}]
  %s6 = inlined_call_operand.vmem [shape: bf16[2,32,96], index: 6, kind: input, shape index: {}]
  %s7 = inlined_call_operand.vmem [shape: bf16[2,32,32], index: 7, kind: input, shape index: {}]
  %s8 = inlined_call_operand.vmem [shape: f32[2,1,32], index: 8, kind: input, shape index: {}]
  %s9 = inlined_call_operand.hbm [shape: bf16[2,32,128], index: 9, kind: input, shape index: {}]
  %s10 = inlined_call_operand.vmem [shape: bf16[2,64,32], index: 10, kind: input, shape index: {}]
  %s11 = inlined_call_operand.vmem [shape: f32[1,32], index: 11, kind: input, shape index: {}]
  %s12 = inlined_call_operand.hbm [shape: bf16[32,128], index: 12, kind: input, shape index: {}]
  %s13 = inlined_call_operand.hbm [shape: f32[16,128], index: 13, kind: output, shape index: {}]
  %s14 = sld [smem:[#allocation0]]
  $region86: #{tpu_custom_call.1} parent=0
    _
  %s16 = ssub.s32 1, %s14
  %s17 = scalar_select 0, %s16, %s14
  $region1: #{tpu_custom_call.1} parent=0
    #allocation2 [shape = 'u8[8192]{0}', space=vmem, size = 0x2000, scoped, tag = 'input window, operand 0, single buffered']
    #allocation3 [shape = 's32[1]{0}', space=sflag, size = 0x4, scoped, tag = 'scoped memory for tpu_custom_call.1']
    #allocation4 [shape = 's32[1]{0}', space=sflag, size = 0x4, scoped, tag = 'scoped memory for tpu_custom_call.1']
    #allocation5 [shape = 'u8[8192]{0}', space=vmem, size = 0x2000, scoped, tag = 'input window, operand 1, single buffered']
    #allocation6 [shape = 's32[1]{0}', space=sflag, size = 0x4, scoped, tag = 'scoped memory for tpu_custom_call.1']
    #allocation7 [shape = 'u8[8192]{0}', space=vmem, size = 0x2000, scoped, tag = 'input window, operand 2, single buffered']
    #allocation8 [shape = 'u8[8192]{0}', space=vmem, size = 0x2000, scoped, tag = 'input window, operand 4, single buffered']
    #allocation9 [shape = 's32[1]{0}', space=sflag, size = 0x4, scoped, tag = 'scoped memory for tpu_custom_call.1']
    #allocation10 [shape = 'u8[16384]{0}', space=vmem, size = 0x4000, scoped, tag = 'input window, operand 9, single buffered']
    #allocation11 [shape = 'u8[8192]{0}', space=vmem, size = 0x2000, scoped, tag = 'input window, operand 12, single buffered']
    #allocation12 [shape = 's32[1]{0}', space=sflag, size = 0x4, scoped, tag = 'scoped memory for tpu_custom_call.1']
    #allocation13 [shape = 'u8[8192]{0}', space=vmem, size = 0x2000, scoped, tag = 'output window, operand 0, single buffered']
    %18 = vsyncpa [#allocation3], 0
    %19 = vsyncpa [#allocation6], 0
    %20 = vsyncpa [#allocation9], 0
    %21 = vsyncpa [#allocation12], 0
    %22 = vsyncpa [#allocation4], 0
    // Predicated region
    $region2: #{tpu_custom_call.1} parent=1 // pred_check
      _
    $region3: #{tpu_custom_call.1} parent=1 // pred_check_branch
      %24 = sbr.rel (0) target = $region5
    $region4: #{tpu_custom_call.1} parent=1 // pred_region
      %26 = vsyncadd [#allocation3], 0
      %s27 = sshll.u32 %s0, 4
      %s28 = int_to_ptr.hbm [resolvable:$true] %s27
      %s29 = sshll.u32 [#allocation2], 4
      %s30 = int_to_ptr.vmem [resolvable:$true] %s29
      %35 = dma.hbm_to_vmem [thread:$0]  %s28, 256, %s30, [#allocation3], 128, 128, 8
    $region5: #{tpu_custom_call.1} parent=1 // pred_fallthru
      _
    // Predicated region
    $region6: #{tpu_custom_call.1} parent=1 // pred_check
      _
    $region7: #{tpu_custom_call.1} parent=1 // pred_check_branch
      %37 = sbr.rel (0) target = $region9
    $region8: #{tpu_custom_call.1} parent=1 // pred_region
      %39 = vsyncadd [#allocation6], 0
      %s40 = sshll.u32 %s1, 4
      %s41 = int_to_ptr.hbm [resolvable:$true] %s40
      %s42 = sshll.u32 [#allocation5], 4
      %s43 = int_to_ptr.vmem [resolvable:$true] %s42
      %48 = dma.hbm_to_vmem [thread:$0]  %s41, 256, %s43, [#allocation6], 128, 128, 8
    $region9: #{tpu_custom_call.1} parent=1 // pred_fallthru
      _
    // Predicated region
    $region10: #{tpu_custom_call.1} parent=1 // pred_check
      _
    $region11: #{tpu_custom_call.1} parent=1 // pred_check_branch
      %50 = sbr.rel (0) target = $region13
    $region12: #{tpu_custom_call.1} parent=1 // pred_region
      %52 = vsyncadd [#allocation6], 0
      %s53 = sshll.u32 %s2, 4
      %s54 = int_to_ptr.hbm [resolvable:$true] %s53
      %s55 = sshll.u32 [#allocation7], 4
      %s56 = int_to_ptr.vmem [resolvable:$true] %s55
      %61 = dma.hbm_to_vmem [thread:$0]  %s54, 256, %s56, [#allocation6], 128, 128, 8
    $region13: #{tpu_custom_call.1} parent=1 // pred_fallthru
      _
    // Predicated region
    $region14: #{tpu_custom_call.1} parent=1 // pred_check
      _
    $region15: #{tpu_custom_call.1} parent=1 // pred_check_branch
      %63 = sbr.rel (0) target = $region17
    $region16: #{tpu_custom_call.1} parent=1 // pred_region
      _
    $region17: #{tpu_custom_call.1} parent=1 // pred_fallthru
      _
    // Predicated region
    $region18: #{tpu_custom_call.1} parent=1 // pred_check
      _
    $region19: #{tpu_custom_call.1} parent=1 // pred_check_branch
      %65 = sbr.rel (0) target = $region21
    $region20: #{tpu_custom_call.1} parent=1 // pred_region
      %67 = vsyncadd [#allocation9], 0
      %s68 = sshll.u32 %s4, 4
      %s69 = int_to_ptr.hbm [resolvable:$true] %s68
      %s70 = sshll.u32 [#allocation8], 4
      %s71 = int_to_ptr.vmem [resolvable:$true] %s70
      %76 = dma.hbm_to_vmem [thread:$0]  %s69, 256, %s71, [#allocation9], 128, 128, 8
    $region21: #{tpu_custom_call.1} parent=1 // pred_fallthru
      _
    // Predicated region
    $region22: #{tpu_custom_call.1} parent=1 // pred_check
      _
    $region23: #{tpu_custom_call.1} parent=1 // pred_check_branch
      %78 = sbr.rel (0) target = $region25
    $region24: #{tpu_custom_call.1} parent=1 // pred_region
      _
    $region25: #{tpu_custom_call.1} parent=1 // pred_fallthru
      _
    // Predicated region
    $region26: #{tpu_custom_call.1} parent=1 // pred_check
      _
    $region27: #{tpu_custom_call.1} parent=1 // pred_check_branch
      %80 = sbr.rel (0) target = $region29
    $region28: #{tpu_custom_call.1} parent=1 // pred_region
      _
    $region29: #{tpu_custom_call.1} parent=1 // pred_fallthru
      _
    // Predicated region
    $region30: #{tpu_custom_call.1} parent=1 // pred_check
      _
    $region31: #{tpu_custom_call.1} parent=1 // pred_check_branch
      %82 = sbr.rel (0) target = $region33
    $region32: #{tpu_custom_call.1} parent=1 // pred_region
      _
    $region33: #{tpu_custom_call.1} parent=1 // pred_fallthru
      _
    // Predicated region
    $region34: #{tpu_custom_call.1} parent=1 // pred_check
      _
    $region35: #{tpu_custom_call.1} parent=1 // pred_check_branch
      %84 = sbr.rel (0) target = $region37
    $region36: #{tpu_custom_call.1} parent=1 // pred_region
      _
    $region37: #{tpu_custom_call.1} parent=1 // pred_fallthru
      _
    // Predicated region
    $region38: #{tpu_custom_call.1} parent=1 // pred_check
      _
    $region39: #{tpu_custom_call.1} parent=1 // pred_check_branch
      %86 = sbr.rel (0) target = $region41
    $region40: #{tpu_custom_call.1} parent=1 // pred_region
      %88 = vsyncadd [#allocation9], 0
      %s89 = sshll.u32 %s9, 4
      %s90 = int_to_ptr.hbm [resolvable:$true] %s89
      %s91 = sshll.u32 [#allocation10], 4
      %s92 = int_to_ptr.vmem [resolvable:$true] %s91
      %97 = dma.hbm_to_vmem [thread:$0]  %s90, 512, %s92, [#allocation9], 64, 64, 4
    $region41: #{tpu_custom_call.1} parent=1 // pred_fallthru
      _
    // Predicated region
    $region42: #{tpu_custom_call.1} parent=1 // pred_check
      _
    $region43: #{tpu_custom_call.1} parent=1 // pred_check_branch
      %99 = sbr.rel (0) target = $region45
    $region44: #{tpu_custom_call.1} parent=1 // pred_region
      _
    $region45: #{tpu_custom_call.1} parent=1 // pred_fallthru
      _
    // Predicated region
    $region46: #{tpu_custom_call.1} parent=1 // pred_check
      _
    $region47: #{tpu_custom_call.1} parent=1 // pred_check_branch
      %101 = sbr.rel (0) target = $region49
    $region48: #{tpu_custom_call.1} parent=1 // pred_region
      _
    $region49: #{tpu_custom_call.1} parent=1 // pred_fallthru
      _
    // Predicated region
    $region50: #{tpu_custom_call.1} parent=1 // pred_check
      _
    $region51: #{tpu_custom_call.1} parent=1 // pred_check_branch
      %103 = sbr.rel (0) target = $region53
    $region52: #{tpu_custom_call.1} parent=1 // pred_region
      %105 = vsyncadd [#allocation12], 0
      %s106 = sshll.u32 %s12, 4
      %s107 = int_to_ptr.hbm [resolvable:$true] %s106
      %s108 = sshll.u32 [#allocation11], 4
      %s109 = int_to_ptr.vmem [resolvable:$true] %s108
      %114 = dma.hbm_to_vmem [thread:$0]  %s107, 256, %s109, [#allocation12], 64, 64, 4
    $region53: #{tpu_custom_call.1} parent=1 // pred_fallthru
      _
    // Predicated region
    $region54: #{tpu_custom_call.1} parent=1 // pred_check
      _
    $region55: #{tpu_custom_call.1} parent=1 // pred_check_branch
      %116 = sbr.rel (0) target = $region57
    $region56: #{tpu_custom_call.1} parent=1 // pred_region
      %118 = dma.done [#allocation3], 256
    $region57: #{tpu_custom_call.1} parent=1 // pred_fallthru
      _
    // Predicated region
    $region58: #{tpu_custom_call.1} parent=1 // pred_check
      _
    $region59: #{tpu_custom_call.1} parent=1 // pred_check_branch
      %120 = sbr.rel (0) target = $region61
    $region60: #{tpu_custom_call.1} parent=1 // pred_region
      %122 = dma.done [#allocation6], 256
    $region61: #{tpu_custom_call.1} parent=1 // pred_fallthru
      _
    // Predicated region
    $region62: #{tpu_custom_call.1} parent=1 // pred_check
      _
    $region63: #{tpu_custom_call.1} parent=1 // pred_check_branch
      %124 = sbr.rel (0) target = $region65
    $region64: #{tpu_custom_call.1} parent=1 // pred_region
      %126 = dma.done [#allocation6], 256
    $region65: #{tpu_custom_call.1} parent=1 // pred_fallthru
      _
    // Predicated region
    $region66: #{tpu_custom_call.1} parent=1 // pred_check
      _
    $region67: #{tpu_custom_call.1} parent=1 // pred_check_branch
      %128 = sbr.rel (0) target = $region69
    $region68: #{tpu_custom_call.1} parent=1 // pred_region
      %130 = dma.done [#allocation9], 256
    $region69: #{tpu_custom_call.1} parent=1 // pred_fallthru
      _
    // Predicated region
    $region70: #{tpu_custom_call.1} parent=1 // pred_check
      _
    $region71: #{tpu_custom_call.1} parent=1 // pred_check_branch
      %132 = sbr.rel (0) target = $region73
    $region72: #{tpu_custom_call.1} parent=1 // pred_region
      %134 = dma.done [#allocation9], 512
    $region73: #{tpu_custom_call.1} parent=1 // pred_fallthru
      _
    // Predicated region
    $region74: #{tpu_custom_call.1} parent=1 // pred_check
      _
    $region75: #{tpu_custom_call.1} parent=1 // pred_check_branch
      %136 = sbr.rel (0) target = $region77
    $region76: #{tpu_custom_call.1} parent=1 // pred_region
      %138 = dma.done [#allocation12], 256
    $region77: #{tpu_custom_call.1} parent=1 // pred_fallthru
      _
    %v140 = vld [vmem:[#allocation2] sm:$0xff]
    %v141 = vld [vmem:[#allocation2 + $0x8] sm:$0xff]
    %v142 = vld [vmem:[#allocation5] sm:$0xff]
    %v143 = vld [vmem:[#allocation5 + $0x8] sm:$0xff]
    %v144 = vld [vmem:[#allocation7] sm:$0xff]
    %v145 = vld [vmem:[#allocation7 + $0x8] sm:$0xff]
    %v146 = vld [vmem:[%s3] sm:$0xff]
    %v147 = vld [vmem:[%s3 + $0x8] sm:$0xff]
    %v148 = vld [vmem:[%s3 + $0x10] sm:$0xff]
    %v149 = vld [vmem:[%s3 + $0x18] sm:$0xff]
    %v150 = vld [vmem:[#allocation8] sm:$0xff]
    %v151 = vld [vmem:[#allocation8 + $0x8] sm:$0xff]
    %v152 = vld [vmem:[%s5] sm:$0x1]
    %v153 = vmul.f32 %v140, %v140
    %v154 = vmul.f32 %v141, %v141
    %vm155 = vcmask 261120
    %v156 = vsel %vm155, %v153, 0.0
    %157 = vadd.xlane.f32.xlu0 %v156
    %v158 = vpop.xlane.xlu0 %157
    %v159 = vsel %vm155, %v154, 0.0
    %160 = vadd.xlane.f32.xlu0 %v159
    %v161 = vpop.xlane.xlu0 %160
    %v162 = vrcp.pop 32.0
    %v163 = vmul.f32 32.0, %v162
    %v164 = vsub.f32 1.0, %v163
    %v165 = vmul.f32 %v162, %v164
    %v166 = vadd.f32 %v162, %v165
    %vm167 = vweird.f32 %v162
    %v168 = vsel %vm167, %v162, %v166
    %v169 = vmul.f32 %v158, %v168
    %v170 = vmul.f32 %v161, %v168
    %v171 = vadd.f32 %v169, 1e-06
    %v172 = vadd.f32 %v170, 1e-06
    %v173 = vrsqrt.pop %v171
    %v174 = vmul.f32 %v173, %v171
    %v175 = vmul.f32 %v174, %v173
    %v176 = vmul.f32 0.5, %v175
    %v177 = vsub.f32 1.5, %v176
    %v178 = vmul.f32 %v173, %v177
    %vm179 = vweird.f32 %v171
    %vm180 = vweird.f32 %v173
    %vm181 = vmor %vm179, %vm180
    %v182 = vsel %vm181, %v173, %v178
    %v183 = vrsqrt.pop %v172
    %v184 = vmul.f32 %v183, %v172
    %v185 = vmul.f32 %v184, %v183
    %v186 = vmul.f32 0.5, %v185
    %v187 = vsub.f32 1.5, %v186
    %v188 = vmul.f32 %v183, %v187
    %vm189 = vweird.f32 %v172
    %vm190 = vweird.f32 %v183
    %vm191 = vmor %vm189, %vm190
    %v192 = vsel %vm191, %v183, %v188
    %v193 = vmul.f32 %v140, %v182
    %v194 = vmul.f32 %v141, %v192
    %v196 = vperm.slane %v152, 0
    %v198 = vmul.f32 %v193, %v196
    %v199 = vmul.f32 %v194, %v196
    %v200 = vpack.c.bf16 %v199, %v198
    %v201 = vld [vmem:[%s6] sm:$0xf]
    %v202 = vld [vmem:[%s6 + $0x4] sm:$0xf]
    %v203 = vld [vmem:[%s6 + $0x8] sm:$0xf]
    %v204 = vld [vmem:[%s6 + $0xc] sm:$0xf]
    %v209 = vunpack.c.l.b16 %v201
    %v210 = vunpack.c.l.b16 %v202
    %v211 = vunpack.c.l.b16 %v203
    %v212 = vunpack.c.l.b16 %v204
    %v213 = vpack.c.b16 %v210, %v209
    %v214 = vpack.c.b16 %v212, %v211
    %v218 = vsel %vm155, %v200, 0
    %220 = vmatpush.bf16.msra.mxu0 0
    %221 = vmatpush.bf16.msra.mxu0 0
    %222 = vmatpush.bf16.msra.mxu0 0
    %223 = vmatpush.bf16.msra.mxu0 0
    %224 = vmatpush.bf16.msra.mxu0 0
    %225 = vmatpush.bf16.msra.mxu0 0
    %226 = vmatpush.bf16.msra.mxu0 %v214
    %227 = vmatpush.bf16.msra.mxu0 %v213
    %228 = vmatmul.bf16.gmra.mxu0 %v218
    %v229 = vpop.f32.mrf.mxu0
    %v230 = vadd.f32 0.0, %v229
    %v231 = vpop.f32.mrf.mxu0
    %v232 = vadd.f32 0.0, %v231
    %233 = vdwg.mxu0
    %v234 = vmul.f32 %v230, %v142
    %v235 = vmul.f32 %v232, %v143
    %v237 = vsel %vm155, %v230, 0
    %v240 = vsel %vm155, %v232, 0
    %242 = vmatpush.msra.mxu0 0.0
    %243 = vmatpush.msra.mxu0 0.0
    %244 = vmatpush.msra.mxu0 0.0
    %245 = vmatpush.msra.mxu0 0.0
    %246 = vmatpush.msra.mxu0 0.0
    %247 = vmatpush.msra.mxu0 0.0
    %248 = vmatpush.msra.mxu0 0.0
    %249 = vmatpush.msra.mxu0 0.0
    %250 = vmatpush.msra.mxu0 0.0
    %251 = vmatpush.msra.mxu0 0.0
    %252 = vmatpush.msra.mxu0 0.0
    %253 = vmatpush.msra.mxu0 0.0
    %254 = vmatpush.msra.mxu0 %v149
    %255 = vmatpush.msra.mxu0 %v148
    %256 = vmatpush.msra.mxu0 %v147
    %257 = vmatpush.msra.mxu0 %v146
    %258 = vmatmul.f32.gmra.mxu0 %v237
    %v259 = vpop.f32.mrf.mxu0
    %v260 = vadd.f32 0.0, %v259
    %261 = vmatmul.f32.gmra.mxu0 %v240
    %v262 = vpop.f32.mrf.mxu0
    %v263 = vadd.f32 0.0, %v262
    %264 = vdwg.mxu0
    %v265 = vmul.f32 %v260, %v144
    %v266 = vmul.f32 %v263, %v145
    %v267 = vadd.f32 %v234, %v265
    %v268 = vadd.f32 %v235, %v266
    %271 = vrot.lane.b32.xlu0 %v142, 32
    %v272 = vpop.permute.xlu0 %271
    %273 = vrot.lane.b32.xlu0 %v143, 32
    %v274 = vpop.permute.xlu0 %273
    %v277 = vmul.f32 %v230, %v272
    %v278 = vmul.f32 %v232, %v274
    %279 = vrot.lane.b32.xlu0 %v230, 96
    %v280 = vpop.permute.xlu0 %279
    %281 = vrot.lane.b32.xlu0 %v232, 96
    %v282 = vpop.permute.xlu0 %281
    %v283 = vsel %vm155, %v280, 0
    %v285 = vsel %vm155, %v282, 0
    %287 = vmatpush.msra.mxu0 0.0
    %288 = vmatpush.msra.mxu0 0.0
    %289 = vmatpush.msra.mxu0 0.0
    %290 = vmatpush.msra.mxu0 0.0
    %291 = vmatpush.msra.mxu0 0.0
    %292 = vmatpush.msra.mxu0 0.0
    %293 = vmatpush.msra.mxu0 0.0
    %294 = vmatpush.msra.mxu0 0.0
    %295 = vmatpush.msra.mxu0 0.0
    %296 = vmatpush.msra.mxu0 0.0
    %297 = vmatpush.msra.mxu0 0.0
    %298 = vmatpush.msra.mxu0 0.0
    %299 = vmatpush.msra.mxu0 %v149
    %300 = vmatpush.msra.mxu0 %v148
    %301 = vmatpush.msra.mxu0 %v147
    %302 = vmatpush.msra.mxu0 %v146
    %303 = vmatmul.f32.gmra.mxu0 %v283
    %v304 = vpop.f32.mrf.mxu0
    %v305 = vadd.f32 0.0, %v304
    %306 = vmatmul.f32.gmra.mxu0 %v285
    %v307 = vpop.f32.mrf.mxu0
    %v308 = vadd.f32 0.0, %v307
    %309 = vdwg.mxu0
    %v310 = vmul.f32 %v305, %v144
    %v311 = vmul.f32 %v308, %v145
    %314 = vrot.lane.b32.xlu0 %v310, 32
    %v315 = vpop.permute.xlu0 %314
    %316 = vrot.lane.b32.xlu0 %v311, 32
    %v317 = vpop.permute.xlu0 %316
    %v320 = vadd.f32 %v277, %v315
    %v321 = vadd.f32 %v278, %v317
    %v322 = vpack.c.bf16 %v267, %v267
    %v323 = vpack.c.bf16 %v268, %v268
    %v324 = vpack.c.bf16 %v320, %v320
    %v325 = vpack.c.bf16 %v321, %v321
    %v326 = vpack.c.bf16 %v230, %v230
    %v327 = vpack.c.bf16 %v232, %v232
    %v330 = vunpack.c.l.b16 %v322
    %v331 = vunpack.c.l.b16 %v323
    %v332 = vpack.c.b16 %v331, %v330
    %v335 = vunpack.c.l.b16 %v324
    %v336 = vunpack.c.l.b16 %v325
    %v337 = vpack.c.b16 %v336, %v335
    %338 = vrot.lane.b32.xlu0 %v337, 96
    %v339 = vpop.permute.xlu0 %338
    %vm340 = vcmask 64512
    %v342 = vsel %vm340, %v332, 0
    %v345 = vsel %vm340, %v339, 0
    %347 = vmatpush.bf16.xpose.msra.mxu0 0
    %348 = vmatpush.bf16.xpose.msra.mxu0 0
    %349 = vmatpush.bf16.xpose.msra.mxu0 0
    %350 = vmatpush.bf16.xpose.msra.mxu0 0
    %351 = vmatpush.bf16.xpose.msra.mxu0 0
    %352 = vmatpush.bf16.xpose.msra.mxu0 0
    %353 = vmatpush.bf16.xpose.msra.mxu0 0
    %354 = vmatpush.bf16.xpose.msra.mxu0 %v345
    %355 = vmatmul.bf16.gmra.mxu0 %v342
    %v356 = vpop.f32.mrf.mxu0
    %v357 = vadd.f32 0.0, %v356
    %v358 = vpop.f32.mrf.mxu0
    %v359 = vadd.f32 0.0, %v358
    %360 = vdwg.mxu0
    %v361 = vmul.f32 %v357, 0.35355338
    %v362 = vmul.f32 %v359, 0.35355338
    %v363 = vadd.f32 %v361, %v150
    %v364 = vadd.f32 %v362, %v151
    %vm365 = vcmask 130048
    %v366 = vsel %vm365, %v363, -inf
    %367 = vmax.xlane.f32.xlu0 %v366
    %v368 = vpop.xlane.xlu0 %367
    %v369 = vsel %vm365, %v364, -inf
    %370 = vmax.xlane.f32.xlu0 %v369
    %v371 = vpop.xlane.xlu0 %370
    %v372 = vsub.f32 %v363, %v368
    %v373 = vsub.f32 %v364, %v371
    %v374 = vmul.f32 %v372, 1.442695
    %v375 = vpow.pop %v374
    %v376 = vmul.f32 %v373, 1.442695
    %v377 = vpow.pop %v376
    %v378 = vsel %vm365, %v375, 0.0
    %379 = vadd.xlane.f32.xlu0 %v378
    %v380 = vpop.xlane.xlu0 %379
    %v381 = vsel %vm365, %v377, 0.0
    %382 = vadd.xlane.f32.xlu0 %v381
    %v383 = vpop.xlane.xlu0 %382
    %v384 = vrcp.pop %v380
    %v385 = vrcp.pop %v383
    %v386 = vmul.f32 %v375, %v384
    %v387 = vmul.f32 %v377, %v385
    %v388 = vpack.c.bf16 %v387, %v386
    %v391 = vunpack.c.l.b16 %v326
    %v392 = vunpack.c.l.b16 %v327
    %v393 = vpack.c.b16 %v392, %v391
    %394 = vrot.lane.b32.xlu0 %v393, 64
    %v395 = vpop.permute.xlu0 %394
    %v398 = vsel %vm365, %v388, 0
    %400 = vmatpush.bf16.msra.mxu0 0
    %401 = vmatpush.bf16.msra.mxu0 0
    %402 = vmatpush.bf16.msra.mxu0 0
    %403 = vmatpush.bf16.msra.mxu0 0
    %404 = vmatpush.bf16.msra.mxu0 0
    %405 = vmatpush.bf16.msra.mxu0 0
    %406 = vmatpush.bf16.msra.mxu0 0
    %407 = vmatpush.bf16.msra.mxu0 %v395
    %408 = vmatmul.bf16.gmra.mxu0 %v398
    %v409 = vpop.f32.mrf.mxu0
    %v410 = vadd.f32 0.0, %v409
    %v411 = vpop.f32.mrf.mxu0
    %v412 = vadd.f32 0.0, %v411
    %413 = vdwg.mxu0
    %414 = vrot.lane.b32.xlu0 %v332, 120
    %v415 = vpop.permute.xlu0 %414
    %416 = vrot.lane.b32.xlu0 %v337, 88
    %v417 = vpop.permute.xlu0 %416
    %v419 = vsel %vm340, %v415, 0
    %v422 = vsel %vm340, %v417, 0
    %424 = vmatpush.bf16.xpose.msra.mxu0 0
    %425 = vmatpush.bf16.xpose.msra.mxu0 0
    %426 = vmatpush.bf16.xpose.msra.mxu0 0
    %427 = vmatpush.bf16.xpose.msra.mxu0 0
    %428 = vmatpush.bf16.xpose.msra.mxu0 0
    %429 = vmatpush.bf16.xpose.msra.mxu0 0
    %430 = vmatpush.bf16.xpose.msra.mxu0 0
    %431 = vmatpush.bf16.xpose.msra.mxu0 %v422
    %432 = vmatmul.bf16.gmra.mxu0 %v419
    %v433 = vpop.f32.mrf.mxu0
    %v434 = vadd.f32 0.0, %v433
    %v435 = vpop.f32.mrf.mxu0
    %v436 = vadd.f32 0.0, %v435
    %437 = vdwg.mxu0
    %v438 = vmul.f32 %v434, 0.35355338
    %v439 = vmul.f32 %v436, 0.35355338
    %v440 = vadd.f32 %v438, %v150
    %v441 = vadd.f32 %v439, %v151
    %v442 = vsel %vm365, %v440, -inf
    %443 = vmax.xlane.f32.xlu0 %v442
    %v444 = vpop.xlane.xlu0 %443
    %v445 = vsel %vm365, %v441, -inf
    %446 = vmax.xlane.f32.xlu0 %v445
    %v447 = vpop.xlane.xlu0 %446
    %v448 = vsub.f32 %v440, %v444
    %v449 = vsub.f32 %v441, %v447
    %v450 = vmul.f32 %v448, 1.442695
    %v451 = vpow.pop %v450
    %v452 = vmul.f32 %v449, 1.442695
    %v453 = vpow.pop %v452
    %v454 = vsel %vm365, %v451, 0.0
    %455 = vadd.xlane.f32.xlu0 %v454
    %v456 = vpop.xlane.xlu0 %455
    %v457 = vsel %vm365, %v453, 0.0
    %458 = vadd.xlane.f32.xlu0 %v457
    %v459 = vpop.xlane.xlu0 %458
    %v460 = vrcp.pop %v456
    %v461 = vrcp.pop %v459
    %v462 = vmul.f32 %v451, %v460
    %v463 = vmul.f32 %v453, %v461
    %v464 = vpack.c.bf16 %v463, %v462
    %465 = vrot.lane.b32.xlu0 %v393, 56
    %v466 = vpop.permute.xlu0 %465
    %v469 = vsel %vm365, %v464, 0
    %471 = vmatpush.bf16.msra.mxu0 0
    %472 = vmatpush.bf16.msra.mxu0 0
    %473 = vmatpush.bf16.msra.mxu0 0
    %474 = vmatpush.bf16.msra.mxu0 0
    %475 = vmatpush.bf16.msra.mxu0 0
    %476 = vmatpush.bf16.msra.mxu0 0
    %477 = vmatpush.bf16.msra.mxu0 0
    %478 = vmatpush.bf16.msra.mxu0 %v466
    %479 = vmatmul.bf16.gmra.mxu0 %v469
    %v480 = vpop.f32.mrf.mxu0
    %v481 = vadd.f32 0.0, %v480
    %v482 = vpop.f32.mrf.mxu0
    %v483 = vadd.f32 0.0, %v482
    %484 = vdwg.mxu0
    %485 = vrot.lane.b32.xlu0 %v332, 112
    %v486 = vpop.permute.xlu0 %485
    %487 = vrot.lane.b32.xlu0 %v337, 80
    %v488 = vpop.permute.xlu0 %487
    %v490 = vsel %vm340, %v486, 0
    %v493 = vsel %vm340, %v488, 0
    %495 = vmatpush.bf16.xpose.msra.mxu0 0
    %496 = vmatpush.bf16.xpose.msra.mxu0 0
    %497 = vmatpush.bf16.xpose.msra.mxu0 0
    %498 = vmatpush.bf16.xpose.msra.mxu0 0
    %499 = vmatpush.bf16.xpose.msra.mxu0 0
    %500 = vmatpush.bf16.xpose.msra.mxu0 0
    %501 = vmatpush.bf16.xpose.msra.mxu0 0
    %502 = vmatpush.bf16.xpose.msra.mxu0 %v493
    %503 = vmatmul.bf16.gmra.mxu0 %v490
    %v504 = vpop.f32.mrf.mxu0
    %v505 = vadd.f32 0.0, %v504
    %v506 = vpop.f32.mrf.mxu0
    %v507 = vadd.f32 0.0, %v506
    %508 = vdwg.mxu0
    %v509 = vmul.f32 %v505, 0.35355338
    %v510 = vmul.f32 %v507, 0.35355338
    %v511 = vadd.f32 %v509, %v150
    %v512 = vadd.f32 %v510, %v151
    %v513 = vsel %vm365, %v511, -inf
    %514 = vmax.xlane.f32.xlu0 %v513
    %v515 = vpop.xlane.xlu0 %514
    %v516 = vsel %vm365, %v512, -inf
    %517 = vmax.xlane.f32.xlu0 %v516
    %v518 = vpop.xlane.xlu0 %517
    %v519 = vsub.f32 %v511, %v515
    %v520 = vsub.f32 %v512, %v518
    %v521 = vmul.f32 %v519, 1.442695
    %v522 = vpow.pop %v521
    %v523 = vmul.f32 %v520, 1.442695
    %v524 = vpow.pop %v523
    %v525 = vsel %vm365, %v522, 0.0
    %526 = vadd.xlane.f32.xlu0 %v525
    %v527 = vpop.xlane.xlu0 %526
    %v528 = vsel %vm365, %v524, 0.0
    %529 = vadd.xlane.f32.xlu0 %v528
    %v530 = vpop.xlane.xlu0 %529
    %v531 = vrcp.pop %v527
    %v532 = vrcp.pop %v530
    %v533 = vmul.f32 %v522, %v531
    %v534 = vmul.f32 %v524, %v532
    %v535 = vpack.c.bf16 %v534, %v533
    %536 = vrot.lane.b32.xlu0 %v393, 48
    %v537 = vpop.permute.xlu0 %536
    %v540 = vsel %vm365, %v535, 0
    %542 = vmatpush.bf16.msra.mxu0 0
    %543 = vmatpush.bf16.msra.mxu0 0
    %544 = vmatpush.bf16.msra.mxu0 0
    %545 = vmatpush.bf16.msra.mxu0 0
    %546 = vmatpush.bf16.msra.mxu0 0
    %547 = vmatpush.bf16.msra.mxu0 0
    %548 = vmatpush.bf16.msra.mxu0 0
    %549 = vmatpush.bf16.msra.mxu0 %v537
    %550 = vmatmul.bf16.gmra.mxu0 %v540
    %v551 = vpop.f32.mrf.mxu0
    %v552 = vadd.f32 0.0, %v551
    %v553 = vpop.f32.mrf.mxu0
    %v554 = vadd.f32 0.0, %v553
    %555 = vdwg.mxu0
    %556 = vrot.lane.b32.xlu0 %v332, 104
    %v557 = vpop.permute.xlu0 %556
    %558 = vrot.lane.b32.xlu0 %v337, 72
    %v559 = vpop.permute.xlu0 %558
    %v561 = vsel %vm340, %v557, 0
    %v564 = vsel %vm340, %v559, 0
    %566 = vmatpush.bf16.xpose.msra.mxu0 0
    %567 = vmatpush.bf16.xpose.msra.mxu0 0
    %568 = vmatpush.bf16.xpose.msra.mxu0 0
    %569 = vmatpush.bf16.xpose.msra.mxu0 0
    %570 = vmatpush.bf16.xpose.msra.mxu0 0
    %571 = vmatpush.bf16.xpose.msra.mxu0 0
    %572 = vmatpush.bf16.xpose.msra.mxu0 0
    %573 = vmatpush.bf16.xpose.msra.mxu0 %v564
    %574 = vmatmul.bf16.gmra.mxu0 %v561
    %v575 = vpop.f32.mrf.mxu0
    %v576 = vadd.f32 0.0, %v575
    %v577 = vpop.f32.mrf.mxu0
    %v578 = vadd.f32 0.0, %v577
    %579 = vdwg.mxu0
    %v580 = vmul.f32 %v576, 0.35355338
    %v581 = vmul.f32 %v578, 0.35355338
    %v582 = vadd.f32 %v580, %v150
    %v583 = vadd.f32 %v581, %v151
    %v584 = vsel %vm365, %v582, -inf
    %585 = vmax.xlane.f32.xlu0 %v584
    %v586 = vpop.xlane.xlu0 %585
    %v587 = vsel %vm365, %v583, -inf
    %588 = vmax.xlane.f32.xlu0 %v587
    %v589 = vpop.xlane.xlu0 %588
    %v590 = vsub.f32 %v582, %v586
    %v591 = vsub.f32 %v583, %v589
    %v592 = vmul.f32 %v590, 1.442695
    %v593 = vpow.pop %v592
    %v594 = vmul.f32 %v591, 1.442695
    %v595 = vpow.pop %v594
    %v596 = vsel %vm365, %v593, 0.0
    %597 = vadd.xlane.f32.xlu0 %v596
    %v598 = vpop.xlane.xlu0 %597
    %v599 = vsel %vm365, %v595, 0.0
    %600 = vadd.xlane.f32.xlu0 %v599
    %v601 = vpop.xlane.xlu0 %600
    %v602 = vrcp.pop %v598
    %v603 = vrcp.pop %v601
    %v604 = vmul.f32 %v593, %v602
    %v605 = vmul.f32 %v595, %v603
    %v606 = vpack.c.bf16 %v605, %v604
    %607 = vrot.lane.b32.xlu0 %v393, 40
    %v608 = vpop.permute.xlu0 %607
    %v611 = vsel %vm365, %v606, 0
    %613 = vmatpush.bf16.msra.mxu0 0
    %614 = vmatpush.bf16.msra.mxu0 0
    %615 = vmatpush.bf16.msra.mxu0 0
    %616 = vmatpush.bf16.msra.mxu0 0
    %617 = vmatpush.bf16.msra.mxu0 0
    %618 = vmatpush.bf16.msra.mxu0 0
    %619 = vmatpush.bf16.msra.mxu0 0
    %620 = vmatpush.bf16.msra.mxu0 %v608
    %621 = vmatmul.bf16.gmra.mxu0 %v611
    %v622 = vpop.f32.mrf.mxu0
    %v623 = vadd.f32 0.0, %v622
    %v624 = vpop.f32.mrf.mxu0
    %v625 = vadd.f32 0.0, %v624
    %626 = vdwg.mxu0
    %629 = vrot.lane.b32.xlu0 %v481, 8
    %v630 = vpop.permute.xlu0 %629
    %631 = vrot.lane.b32.xlu0 %v483, 8
    %v632 = vpop.permute.xlu0 %631
    %637 = vrot.lane.b32.xlu0 %v552, 16
    %v638 = vpop.permute.xlu0 %637
    %639 = vrot.lane.b32.xlu0 %v554, 16
    %v640 = vpop.permute.xlu0 %639
    %645 = vrot.lane.b32.xlu0 %v623, 24
    %v646 = vpop.permute.xlu0 %645
    %647 = vrot.lane.b32.xlu0 %v625, 24
    %v648 = vpop.permute.xlu0 %647
    %v651 = vsel %vm340, %v410, %v630
    %v652 = vsel %vm340, %v412, %v632
    %v653 = vsel %vm365, %v651, %v638
    %v654 = vsel %vm365, %v652, %v640
    %vm655 = vcmask 195584
    %v656 = vsel %vm655, %v653, %v646
    %v657 = vsel %vm655, %v654, %v648
    %v658 = vpack.c.bf16 %v657, %v656
    %v659 = vld [vmem:[%s7] sm:$0xf]
    %v660 = vld [vmem:[%s7 + $0x4] sm:$0xf]
    %v661 = vld [vmem:[%s7 + $0x8] sm:$0xf]
    %v662 = vld [vmem:[%s7 + $0xc] sm:$0xf]
    %v667 = vunpack.c.l.b16 %v659
    %v668 = vunpack.c.l.b16 %v660
    %v669 = vunpack.c.l.b16 %v661
    %v670 = vunpack.c.l.b16 %v662
    %v671 = vpack.c.b16 %v668, %v667
    %v672 = vpack.c.b16 %v670, %v669
    %v676 = vsel %vm155, %v658, 0
    %678 = vmatpush.bf16.msra.mxu0 0
    %679 = vmatpush.bf16.msra.mxu0 0
    %680 = vmatpush.bf16.msra.mxu0 0
    %681 = vmatpush.bf16.msra.mxu0 0
    %682 = vmatpush.bf16.msra.mxu0 0
    %683 = vmatpush.bf16.msra.mxu0 0
    %684 = vmatpush.bf16.msra.mxu0 %v672
    %685 = vmatpush.bf16.msra.mxu0 %v671
    %686 = vmatmul.bf16.gmra.mxu0 %v676
    %v687 = vpop.f32.mrf.mxu0
    %v688 = vadd.f32 0.0, %v687
    %v689 = vpop.f32.mrf.mxu0
    %v690 = vadd.f32 0.0, %v689
    %691 = vdwg.mxu0
    %v692 = vadd.f32 %v140, %v688
    %v693 = vadd.f32 %v141, %v690
    %v694 = vld [vmem:[%s8] sm:$0x1]
    %v695 = vmul.f32 %v692, %v692
    %v696 = vmul.f32 %v693, %v693
    %v697 = vsel %vm155, %v695, 0.0
    %698 = vadd.xlane.f32.xlu0 %v697
    %v699 = vpop.xlane.xlu0 %698
    %v700 = vsel %vm155, %v696, 0.0
    %701 = vadd.xlane.f32.xlu0 %v700
    %v702 = vpop.xlane.xlu0 %701
    %v703 = vmul.f32 %v699, %v168
    %v704 = vmul.f32 %v702, %v168
    %v705 = vadd.f32 %v703, 1e-06
    %v706 = vadd.f32 %v704, 1e-06
    %v707 = vrsqrt.pop %v705
    %v708 = vmul.f32 %v707, %v705
    %v709 = vmul.f32 %v708, %v707
    %v710 = vmul.f32 0.5, %v709
    %v711 = vsub.f32 1.5, %v710
    %v712 = vmul.f32 %v707, %v711
    %vm713 = vweird.f32 %v705
    %vm714 = vweird.f32 %v707
    %vm715 = vmor %vm713, %vm714
    %v716 = vsel %vm715, %v707, %v712
    %v717 = vrsqrt.pop %v706
    %v718 = vmul.f32 %v717, %v706
    %v719 = vmul.f32 %v718, %v717
    %v720 = vmul.f32 0.5, %v719
    %v721 = vsub.f32 1.5, %v720
    %v722 = vmul.f32 %v717, %v721
    %vm723 = vweird.f32 %v706
    %vm724 = vweird.f32 %v717
    %vm725 = vmor %vm723, %vm724
    %v726 = vsel %vm725, %v717, %v722
    %v727 = vmul.f32 %v692, %v716
    %v728 = vmul.f32 %v693, %v726
    %v730 = vperm.slane %v694, 0
    %v732 = vmul.f32 %v727, %v730
    %v733 = vmul.f32 %v728, %v730
    %v734 = vpack.c.bf16 %v733, %v732
    %v735 = vld [vmem:[#allocation10] sm:$0xf]
    %v736 = vld [vmem:[#allocation10 + $0x4] sm:$0xf]
    %v737 = vld [vmem:[#allocation10 + $0x8] sm:$0xf]
    %v738 = vld [vmem:[#allocation10 + $0xc] sm:$0xf]
    %v743 = vunpack.c.l.b16 %v735
    %v744 = vunpack.c.l.b16 %v736
    %v745 = vunpack.c.l.b16 %v737
    %v746 = vunpack.c.l.b16 %v738
    %v747 = vpack.c.b16 %v744, %v743
    %v748 = vpack.c.b16 %v746, %v745
    %v752 = vsel %vm155, %v734, 0
    %754 = vmatpush.bf16.msra.mxu0 0
    %755 = vmatpush.bf16.msra.mxu0 0
    %756 = vmatpush.bf16.msra.mxu0 0
    %757 = vmatpush.bf16.msra.mxu0 0
    %758 = vmatpush.bf16.msra.mxu0 0
    %759 = vmatpush.bf16.msra.mxu0 0
    %760 = vmatpush.bf16.msra.mxu0 %v748
    %761 = vmatpush.bf16.msra.mxu0 %v747
    %762 = vmatmul.bf16.gmra.mxu0 %v752
    %v763 = vpop.f32.mrf.mxu0
    %v764 = vadd.f32 0.0, %v763
    %v765 = vpop.f32.mrf.mxu0
    %v766 = vadd.f32 0.0, %v765
    %767 = vdwg.mxu0
    %v768 = vsub.f32 0.0, %v764
    %v769 = vsub.f32 0.0, %v766
    %v770 = vmul.f32 %v768, 1.442695
    %v771 = vpow.pop %v770
    %v772 = vmul.f32 %v769, 1.442695
    %v773 = vpow.pop %v772
    %v774 = vadd.f32 %v771, 1.0
    %v775 = vadd.f32 %v773, 1.0
    %v776 = vrcp.pop %v774
    %v777 = vmul.f32 %v774, %v776
    %v778 = vsub.f32 1.0, %v777
    %v779 = vmul.f32 %v776, %v778
    %v780 = vadd.f32 %v776, %v779
    %vm781 = vweird.f32 %v774
    %vm782 = vweird.f32 %v776
    %vm783 = vmor %vm781, %vm782
    %v784 = vsel %vm783, %v776, %v780
    %v785 = vand.u32 2147483647, %v774
    %vm786 = vcmp.eq.f32.partialorder %v785, 8.507059e+37
    %v787 = vand.u32 %v774, 2147483648
    %v788 = vor.u32 1.1754944e-38, %v787
    %v789 = vsel %vm786, %v788, %v784
    %v790 = vmul.f32 1.0, %v789
    %v791 = vrcp.pop %v775
    %v792 = vmul.f32 %v775, %v791
    %v793 = vsub.f32 1.0, %v792
    %v794 = vmul.f32 %v791, %v793
    %v795 = vadd.f32 %v791, %v794
    %vm796 = vweird.f32 %v775
    %vm797 = vweird.f32 %v791
    %vm798 = vmor %vm796, %vm797
    %v799 = vsel %vm798, %v791, %v795
    %v800 = vand.u32 2147483647, %v775
    %vm801 = vcmp.eq.f32.partialorder %v800, 8.507059e+37
    %v802 = vand.u32 %v775, 2147483648
    %v803 = vor.u32 1.1754944e-38, %v802
    %v804 = vsel %vm801, %v803, %v799
    %v805 = vmul.f32 1.0, %v804
    %v806 = vmul.f32 %v764, %v790
    %v807 = vmul.f32 %v766, %v805
    %810 = vrot.lane.b32.xlu0 %v764, 64
    %v811 = vpop.permute.xlu0 %810
    %812 = vrot.lane.b32.xlu0 %v766, 64
    %v813 = vpop.permute.xlu0 %812
    %v816 = vmul.f32 %v806, %v811
    %v817 = vmul.f32 %v807, %v813
    %v818 = vpack.c.bf16 %v817, %v816
    %v819 = vld [vmem:[%s10] sm:$0xf]
    %v820 = vld [vmem:[%s10 + $0x4] sm:$0xf]
    %v821 = vld [vmem:[%s10 + $0x8] sm:$0xf]
    %v822 = vld [vmem:[%s10 + $0xc] sm:$0xf]
    %v823 = vld [vmem:[%s10 + $0x10] sm:$0xf]
    %v824 = vld [vmem:[%s10 + $0x14] sm:$0xf]
    %v825 = vld [vmem:[%s10 + $0x18] sm:$0xf]
    %v826 = vld [vmem:[%s10 + $0x1c] sm:$0xf]
    %v835 = vunpack.c.l.b16 %v819
    %v836 = vunpack.c.l.b16 %v820
    %v837 = vunpack.c.l.b16 %v821
    %v838 = vunpack.c.l.b16 %v822
    %v839 = vunpack.c.l.b16 %v823
    %v840 = vunpack.c.l.b16 %v824
    %v841 = vunpack.c.l.b16 %v825
    %v842 = vunpack.c.l.b16 %v826
    %v843 = vpack.c.b16 %v836, %v835
    %v844 = vpack.c.b16 %v838, %v837
    %v845 = vpack.c.b16 %v840, %v839
    %v846 = vpack.c.b16 %v842, %v841
    %vm851 = vcmask 523264
    %v853 = vsel %vm851, %v818, 0
    %855 = vmatpush.bf16.msra.mxu0 0
    %856 = vmatpush.bf16.msra.mxu0 0
    %857 = vmatpush.bf16.msra.mxu0 0
    %858 = vmatpush.bf16.msra.mxu0 0
    %859 = vmatpush.bf16.msra.mxu0 %v846
    %860 = vmatpush.bf16.msra.mxu0 %v845
    %861 = vmatpush.bf16.msra.mxu0 %v844
    %862 = vmatpush.bf16.msra.mxu0 %v843
    %863 = vmatmul.bf16.gmra.mxu0 %v853
    %v864 = vpop.f32.mrf.mxu0
    %v865 = vadd.f32 0.0, %v864
    %v866 = vpop.f32.mrf.mxu0
    %v867 = vadd.f32 0.0, %v866
    %868 = vdwg.mxu0
    %v869 = vadd.f32 %v692, %v865
    %v870 = vadd.f32 %v693, %v867
    %s871 = scalar_lea.vmem %s5, 1
    %v872 = vld [vmem:[%s871] sm:$0x1]
    %v873 = vmul.f32 %v869, %v869
    %v874 = vmul.f32 %v870, %v870
    %v875 = vsel %vm155, %v873, 0.0
    %876 = vadd.xlane.f32.xlu0 %v875
    %v877 = vpop.xlane.xlu0 %876
    %v878 = vsel %vm155, %v874, 0.0
    %879 = vadd.xlane.f32.xlu0 %v878
    %v880 = vpop.xlane.xlu0 %879
    %v881 = vmul.f32 %v877, %v168
    %v882 = vmul.f32 %v880, %v168
    %v883 = vadd.f32 %v881, 1e-06
    %v884 = vadd.f32 %v882, 1e-06
    %v885 = vrsqrt.pop %v883
    %v886 = vmul.f32 %v885, %v883
    %v887 = vmul.f32 %v886, %v885
    %v888 = vmul.f32 0.5, %v887
    %v889 = vsub.f32 1.5, %v888
    %v890 = vmul.f32 %v885, %v889
    %vm891 = vweird.f32 %v883
    %vm892 = vweird.f32 %v885
    %vm893 = vmor %vm891, %vm892
    %v894 = vsel %vm893, %v885, %v890
    %v895 = vrsqrt.pop %v884
    %v896 = vmul.f32 %v895, %v884
    %v897 = vmul.f32 %v896, %v895
    %v898 = vmul.f32 0.5, %v897
    %v899 = vsub.f32 1.5, %v898
    %v900 = vmul.f32 %v895, %v899
    %vm901 = vweird.f32 %v884
    %vm902 = vweird.f32 %v895
    %vm903 = vmor %vm901, %vm902
    %v904 = vsel %vm903, %v895, %v900
    %v905 = vmul.f32 %v869, %v894
    %v906 = vmul.f32 %v870, %v904
    %v908 = vperm.slane %v872, 0
    %v910 = vmul.f32 %v905, %v908
    %v911 = vmul.f32 %v906, %v908
    %v912 = vpack.c.bf16 %v911, %v910
    %s913 = scalar_lea.vmem %s6, 16
    %v914 = vld [vmem:[%s913] sm:$0xf]
    %v915 = vld [vmem:[%s913 + $0x4] sm:$0xf]
    %v916 = vld [vmem:[%s913 + $0x8] sm:$0xf]
    %v917 = vld [vmem:[%s913 + $0xc] sm:$0xf]
    %v922 = vunpack.c.l.b16 %v914
    %v923 = vunpack.c.l.b16 %v915
    %v924 = vunpack.c.l.b16 %v916
    %v925 = vunpack.c.l.b16 %v917
    %v926 = vpack.c.b16 %v923, %v922
    %v927 = vpack.c.b16 %v925, %v924
    %v931 = vsel %vm155, %v912, 0
    %933 = vmatpush.bf16.msra.mxu0 0
    %934 = vmatpush.bf16.msra.mxu0 0
    %935 = vmatpush.bf16.msra.mxu0 0
    %936 = vmatpush.bf16.msra.mxu0 0
    %937 = vmatpush.bf16.msra.mxu0 0
    %938 = vmatpush.bf16.msra.mxu0 0
    %939 = vmatpush.bf16.msra.mxu0 %v927
    %940 = vmatpush.bf16.msra.mxu0 %v926
    %941 = vmatmul.bf16.gmra.mxu0 %v931
    %v942 = vpop.f32.mrf.mxu0
    %v943 = vadd.f32 0.0, %v942
    %v944 = vpop.f32.mrf.mxu0
    %v945 = vadd.f32 0.0, %v944
    %946 = vdwg.mxu0
    %v947 = vmul.f32 %v943, %v142
    %v948 = vmul.f32 %v945, %v143
    %v950 = vsel %vm155, %v943, 0
    %v953 = vsel %vm155, %v945, 0
    %955 = vmatpush.msra.mxu0 0.0
    %956 = vmatpush.msra.mxu0 0.0
    %957 = vmatpush.msra.mxu0 0.0
    %958 = vmatpush.msra.mxu0 0.0
    %959 = vmatpush.msra.mxu0 0.0
    %960 = vmatpush.msra.mxu0 0.0
    %961 = vmatpush.msra.mxu0 0.0
    %962 = vmatpush.msra.mxu0 0.0
    %963 = vmatpush.msra.mxu0 0.0
    %964 = vmatpush.msra.mxu0 0.0
    %965 = vmatpush.msra.mxu0 0.0
    %966 = vmatpush.msra.mxu0 0.0
    %967 = vmatpush.msra.mxu0 %v149
    %968 = vmatpush.msra.mxu0 %v148
    %969 = vmatpush.msra.mxu0 %v147
    %970 = vmatpush.msra.mxu0 %v146
    %971 = vmatmul.f32.gmra.mxu0 %v950
    %v972 = vpop.f32.mrf.mxu0
    %v973 = vadd.f32 0.0, %v972
    %974 = vmatmul.f32.gmra.mxu0 %v953
    %v975 = vpop.f32.mrf.mxu0
    %v976 = vadd.f32 0.0, %v975
    %977 = vdwg.mxu0
    %v978 = vmul.f32 %v973, %v144
    %v979 = vmul.f32 %v976, %v145
    %v980 = vadd.f32 %v947, %v978
    %v981 = vadd.f32 %v948, %v979
    %v982 = vmul.f32 %v943, %v272
    %v983 = vmul.f32 %v945, %v274
    %984 = vrot.lane.b32.xlu0 %v943, 96
    %v985 = vpop.permute.xlu0 %984
    %986 = vrot.lane.b32.xlu0 %v945, 96
    %v987 = vpop.permute.xlu0 %986
    %v988 = vsel %vm155, %v985, 0
    %v990 = vsel %vm155, %v987, 0
    %992 = vmatpush.msra.mxu0 0.0
    %993 = vmatpush.msra.mxu0 0.0
    %994 = vmatpush.msra.mxu0 0.0
    %995 = vmatpush.msra.mxu0 0.0
    %996 = vmatpush.msra.mxu0 0.0
    %997 = vmatpush.msra.mxu0 0.0
    %998 = vmatpush.msra.mxu0 0.0
    %999 = vmatpush.msra.mxu0 0.0
    %1000 = vmatpush.msra.mxu0 0.0
    %1001 = vmatpush.msra.mxu0 0.0
    %1002 = vmatpush.msra.mxu0 0.0
    %1003 = vmatpush.msra.mxu0 0.0
    %1004 = vmatpush.msra.mxu0 %v149
    %1005 = vmatpush.msra.mxu0 %v148
    %1006 = vmatpush.msra.mxu0 %v147
    %1007 = vmatpush.msra.mxu0 %v146
    %1008 = vmatmul.f32.gmra.mxu0 %v988
    %v1009 = vpop.f32.mrf.mxu0
    %v1010 = vadd.f32 0.0, %v1009
    %1011 = vmatmul.f32.gmra.mxu0 %v990
    %v1012 = vpop.f32.mrf.mxu0
    %v1013 = vadd.f32 0.0, %v1012
    %1014 = vdwg.mxu0
    %v1015 = vmul.f32 %v1010, %v144
    %v1016 = vmul.f32 %v1013, %v145
    %1019 = vrot.lane.b32.xlu0 %v1015, 32
    %v1020 = vpop.permute.xlu0 %1019
    %1021 = vrot.lane.b32.xlu0 %v1016, 32
    %v1022 = vpop.permute.xlu0 %1021
    %v1025 = vadd.f32 %v982, %v1020
    %v1026 = vadd.f32 %v983, %v1022
    %v1027 = vpack.c.bf16 %v980, %v980
    %v1028 = vpack.c.bf16 %v981, %v981
    %v1029 = vpack.c.bf16 %v1025, %v1025
    %v1030 = vpack.c.bf16 %v1026, %v1026
    %v1031 = vpack.c.bf16 %v943, %v943
    %v1032 = vpack.c.bf16 %v945, %v945
    %v1035 = vunpack.c.l.b16 %v1027
    %v1036 = vunpack.c.l.b16 %v1028
    %v1037 = vpack.c.b16 %v1036, %v1035
    %v1040 = vunpack.c.l.b16 %v1029
    %v1041 = vunpack.c.l.b16 %v1030
    %v1042 = vpack.c.b16 %v1041, %v1040
    %1043 = vrot.lane.b32.xlu0 %v1042, 96
    %v1044 = vpop.permute.xlu0 %1043
    %v1046 = vsel %vm340, %v1037, 0
    %v1049 = vsel %vm340, %v1044, 0
    %1051 = vmatpush.bf16.xpose.msra.mxu0 0
    %1052 = vmatpush.bf16.xpose.msra.mxu0 0
    %1053 = vmatpush.bf16.xpose.msra.mxu0 0
    %1054 = vmatpush.bf16.xpose.msra.mxu0 0
    %1055 = vmatpush.bf16.xpose.msra.mxu0 0
    %1056 = vmatpush.bf16.xpose.msra.mxu0 0
    %1057 = vmatpush.bf16.xpose.msra.mxu0 0
    %1058 = vmatpush.bf16.xpose.msra.mxu0 %v1049
    %1059 = vmatmul.bf16.gmra.mxu0 %v1046
    %v1060 = vpop.f32.mrf.mxu0
    %v1061 = vadd.f32 0.0, %v1060
    %v1062 = vpop.f32.mrf.mxu0
    %v1063 = vadd.f32 0.0, %v1062
    %1064 = vdwg.mxu0
    %v1065 = vmul.f32 %v1061, 0.35355338
    %v1066 = vmul.f32 %v1063, 0.35355338
    %v1067 = vadd.f32 %v1065, %v150
    %v1068 = vadd.f32 %v1066, %v151
    %v1069 = vsel %vm365, %v1067, -inf
    %1070 = vmax.xlane.f32.xlu0 %v1069
    %v1071 = vpop.xlane.xlu0 %1070
    %v1072 = vsel %vm365, %v1068, -inf
    %1073 = vmax.xlane.f32.xlu0 %v1072
    %v1074 = vpop.xlane.xlu0 %1073
    %v1075 = vsub.f32 %v1067, %v1071
    %v1076 = vsub.f32 %v1068, %v1074
    %v1077 = vmul.f32 %v1075, 1.442695
    %v1078 = vpow.pop %v1077
    %v1079 = vmul.f32 %v1076, 1.442695
    %v1080 = vpow.pop %v1079
    %v1081 = vsel %vm365, %v1078, 0.0
    %1082 = vadd.xlane.f32.xlu0 %v1081
    %v1083 = vpop.xlane.xlu0 %1082
    %v1084 = vsel %vm365, %v1080, 0.0
    %1085 = vadd.xlane.f32.xlu0 %v1084
    %v1086 = vpop.xlane.xlu0 %1085
    %v1087 = vrcp.pop %v1083
    %v1088 = vrcp.pop %v1086
    %v1089 = vmul.f32 %v1078, %v1087
    %v1090 = vmul.f32 %v1080, %v1088
    %v1091 = vpack.c.bf16 %v1090, %v1089
    %v1094 = vunpack.c.l.b16 %v1031
    %v1095 = vunpack.c.l.b16 %v1032
    %v1096 = vpack.c.b16 %v1095, %v1094
    %1097 = vrot.lane.b32.xlu0 %v1096, 64
    %v1098 = vpop.permute.xlu0 %1097
    %v1101 = vsel %vm365, %v1091, 0
    %1103 = vmatpush.bf16.msra.mxu0 0
    %1104 = vmatpush.bf16.msra.mxu0 0
    %1105 = vmatpush.bf16.msra.mxu0 0
    %1106 = vmatpush.bf16.msra.mxu0 0
    %1107 = vmatpush.bf16.msra.mxu0 0
    %1108 = vmatpush.bf16.msra.mxu0 0
    %1109 = vmatpush.bf16.msra.mxu0 0
    %1110 = vmatpush.bf16.msra.mxu0 %v1098
    %1111 = vmatmul.bf16.gmra.mxu0 %v1101
    %v1112 = vpop.f32.mrf.mxu0
    %v1113 = vadd.f32 0.0, %v1112
    %v1114 = vpop.f32.mrf.mxu0
    %v1115 = vadd.f32 0.0, %v1114
    %1116 = vdwg.mxu0
    %1117 = vrot.lane.b32.xlu0 %v1037, 120
    %v1118 = vpop.permute.xlu0 %1117
    %1119 = vrot.lane.b32.xlu0 %v1042, 88
    %v1120 = vpop.permute.xlu0 %1119
    %v1122 = vsel %vm340, %v1118, 0
    %v1125 = vsel %vm340, %v1120, 0
    %1127 = vmatpush.bf16.xpose.msra.mxu0 0
    %1128 = vmatpush.bf16.xpose.msra.mxu0 0
    %1129 = vmatpush.bf16.xpose.msra.mxu0 0
    %1130 = vmatpush.bf16.xpose.msra.mxu0 0
    %1131 = vmatpush.bf16.xpose.msra.mxu0 0
    %1132 = vmatpush.bf16.xpose.msra.mxu0 0
    %1133 = vmatpush.bf16.xpose.msra.mxu0 0
    %1134 = vmatpush.bf16.xpose.msra.mxu0 %v1125
    %1135 = vmatmul.bf16.gmra.mxu0 %v1122
    %v1136 = vpop.f32.mrf.mxu0
    %v1137 = vadd.f32 0.0, %v1136
    %v1138 = vpop.f32.mrf.mxu0
    %v1139 = vadd.f32 0.0, %v1138
    %1140 = vdwg.mxu0
    %v1141 = vmul.f32 %v1137, 0.35355338
    %v1142 = vmul.f32 %v1139, 0.35355338
    %v1143 = vadd.f32 %v1141, %v150
    %v1144 = vadd.f32 %v1142, %v151
    %v1145 = vsel %vm365, %v1143, -inf
    %1146 = vmax.xlane.f32.xlu0 %v1145
    %v1147 = vpop.xlane.xlu0 %1146
    %v1148 = vsel %vm365, %v1144, -inf
    %1149 = vmax.xlane.f32.xlu0 %v1148
    %v1150 = vpop.xlane.xlu0 %1149
    %v1151 = vsub.f32 %v1143, %v1147
    %v1152 = vsub.f32 %v1144, %v1150
    %v1153 = vmul.f32 %v1151, 1.442695
    %v1154 = vpow.pop %v1153
    %v1155 = vmul.f32 %v1152, 1.442695
    %v1156 = vpow.pop %v1155
    %v1157 = vsel %vm365, %v1154, 0.0
    %1158 = vadd.xlane.f32.xlu0 %v1157
    %v1159 = vpop.xlane.xlu0 %1158
    %v1160 = vsel %vm365, %v1156, 0.0
    %1161 = vadd.xlane.f32.xlu0 %v1160
    %v1162 = vpop.xlane.xlu0 %1161
    %v1163 = vrcp.pop %v1159
    %v1164 = vrcp.pop %v1162
    %v1165 = vmul.f32 %v1154, %v1163
    %v1166 = vmul.f32 %v1156, %v1164
    %v1167 = vpack.c.bf16 %v1166, %v1165
    %1168 = vrot.lane.b32.xlu0 %v1096, 56
    %v1169 = vpop.permute.xlu0 %1168
    %v1172 = vsel %vm365, %v1167, 0
    %1174 = vmatpush.bf16.msra.mxu0 0
    %1175 = vmatpush.bf16.msra.mxu0 0
    %1176 = vmatpush.bf16.msra.mxu0 0
    %1177 = vmatpush.bf16.msra.mxu0 0
    %1178 = vmatpush.bf16.msra.mxu0 0
    %1179 = vmatpush.bf16.msra.mxu0 0
    %1180 = vmatpush.bf16.msra.mxu0 0
    %1181 = vmatpush.bf16.msra.mxu0 %v1169
    %1182 = vmatmul.bf16.gmra.mxu0 %v1172
    %v1183 = vpop.f32.mrf.mxu0
    %v1184 = vadd.f32 0.0, %v1183
    %v1185 = vpop.f32.mrf.mxu0
    %v1186 = vadd.f32 0.0, %v1185
    %1187 = vdwg.mxu0
    %1188 = vrot.lane.b32.xlu0 %v1037, 112
    %v1189 = vpop.permute.xlu0 %1188
    %1190 = vrot.lane.b32.xlu0 %v1042, 80
    %v1191 = vpop.permute.xlu0 %1190
    %v1193 = vsel %vm340, %v1189, 0
    %v1196 = vsel %vm340, %v1191, 0
    %1198 = vmatpush.bf16.xpose.msra.mxu0 0
    %1199 = vmatpush.bf16.xpose.msra.mxu0 0
    %1200 = vmatpush.bf16.xpose.msra.mxu0 0
    %1201 = vmatpush.bf16.xpose.msra.mxu0 0
    %1202 = vmatpush.bf16.xpose.msra.mxu0 0
    %1203 = vmatpush.bf16.xpose.msra.mxu0 0
    %1204 = vmatpush.bf16.xpose.msra.mxu0 0
    %1205 = vmatpush.bf16.xpose.msra.mxu0 %v1196
    %1206 = vmatmul.bf16.gmra.mxu0 %v1193
    %v1207 = vpop.f32.mrf.mxu0
    %v1208 = vadd.f32 0.0, %v1207
    %v1209 = vpop.f32.mrf.mxu0
    %v1210 = vadd.f32 0.0, %v1209
    %1211 = vdwg.mxu0
    %v1212 = vmul.f32 %v1208, 0.35355338
    %v1213 = vmul.f32 %v1210, 0.35355338
    %v1214 = vadd.f32 %v1212, %v150
    %v1215 = vadd.f32 %v1213, %v151
    %v1216 = vsel %vm365, %v1214, -inf
    %1217 = vmax.xlane.f32.xlu0 %v1216
    %v1218 = vpop.xlane.xlu0 %1217
    %v1219 = vsel %vm365, %v1215, -inf
    %1220 = vmax.xlane.f32.xlu0 %v1219
    %v1221 = vpop.xlane.xlu0 %1220
    %v1222 = vsub.f32 %v1214, %v1218
    %v1223 = vsub.f32 %v1215, %v1221
    %v1224 = vmul.f32 %v1222, 1.442695
    %v1225 = vpow.pop %v1224
    %v1226 = vmul.f32 %v1223, 1.442695
    %v1227 = vpow.pop %v1226
    %v1228 = vsel %vm365, %v1225, 0.0
    %1229 = vadd.xlane.f32.xlu0 %v1228
    %v1230 = vpop.xlane.xlu0 %1229
    %v1231 = vsel %vm365, %v1227, 0.0
    %1232 = vadd.xlane.f32.xlu0 %v1231
    %v1233 = vpop.xlane.xlu0 %1232
    %v1234 = vrcp.pop %v1230
    %v1235 = vrcp.pop %v1233
    %v1236 = vmul.f32 %v1225, %v1234
    %v1237 = vmul.f32 %v1227, %v1235
    %v1238 = vpack.c.bf16 %v1237, %v1236
    %1239 = vrot.lane.b32.xlu0 %v1096, 48
    %v1240 = vpop.permute.xlu0 %1239
    %v1243 = vsel %vm365, %v1238, 0
    %1245 = vmatpush.bf16.msra.mxu0 0
    %1246 = vmatpush.bf16.msra.mxu0 0
    %1247 = vmatpush.bf16.msra.mxu0 0
    %1248 = vmatpush.bf16.msra.mxu0 0
    %1249 = vmatpush.bf16.msra.mxu0 0
    %1250 = vmatpush.bf16.msra.mxu0 0
    %1251 = vmatpush.bf16.msra.mxu0 0
    %1252 = vmatpush.bf16.msra.mxu0 %v1240
    %1253 = vmatmul.bf16.gmra.mxu0 %v1243
    %v1254 = vpop.f32.mrf.mxu0
    %v1255 = vadd.f32 0.0, %v1254
    %v1256 = vpop.f32.mrf.mxu0
    %v1257 = vadd.f32 0.0, %v1256
    %1258 = vdwg.mxu0
    %1259 = vrot.lane.b32.xlu0 %v1037, 104
    %v1260 = vpop.permute.xlu0 %1259
    %1261 = vrot.lane.b32.xlu0 %v1042, 72
    %v1262 = vpop.permute.xlu0 %1261
    %v1264 = vsel %vm340, %v1260, 0
    %v1267 = vsel %vm340, %v1262, 0
    %1269 = vmatpush.bf16.xpose.msra.mxu0 0
    %1270 = vmatpush.bf16.xpose.msra.mxu0 0
    %1271 = vmatpush.bf16.xpose.msra.mxu0 0
    %1272 = vmatpush.bf16.xpose.msra.mxu0 0
    %1273 = vmatpush.bf16.xpose.msra.mxu0 0
    %1274 = vmatpush.bf16.xpose.msra.mxu0 0
    %1275 = vmatpush.bf16.xpose.msra.mxu0 0
    %1276 = vmatpush.bf16.xpose.msra.mxu0 %v1267
    %1277 = vmatmul.bf16.gmra.mxu0 %v1264
    %v1278 = vpop.f32.mrf.mxu0
    %v1279 = vadd.f32 0.0, %v1278
    %v1280 = vpop.f32.mrf.mxu0
    %v1281 = vadd.f32 0.0, %v1280
    %1282 = vdwg.mxu0
    %v1283 = vmul.f32 %v1279, 0.35355338
    %v1284 = vmul.f32 %v1281, 0.35355338
    %v1285 = vadd.f32 %v1283, %v150
    %v1286 = vadd.f32 %v1284, %v151
    %v1287 = vsel %vm365, %v1285, -inf
    %1288 = vmax.xlane.f32.xlu0 %v1287
    %v1289 = vpop.xlane.xlu0 %1288
    %v1290 = vsel %vm365, %v1286, -inf
    %1291 = vmax.xlane.f32.xlu0 %v1290
    %v1292 = vpop.xlane.xlu0 %1291
    %v1293 = vsub.f32 %v1285, %v1289
    %v1294 = vsub.f32 %v1286, %v1292
    %v1295 = vmul.f32 %v1293, 1.442695
    %v1296 = vpow.pop %v1295
    %v1297 = vmul.f32 %v1294, 1.442695
    %v1298 = vpow.pop %v1297
    %v1299 = vsel %vm365, %v1296, 0.0
    %1300 = vadd.xlane.f32.xlu0 %v1299
    %v1301 = vpop.xlane.xlu0 %1300
    %v1302 = vsel %vm365, %v1298, 0.0
    %1303 = vadd.xlane.f32.xlu0 %v1302
    %v1304 = vpop.xlane.xlu0 %1303
    %v1305 = vrcp.pop %v1301
    %v1306 = vrcp.pop %v1304
    %v1307 = vmul.f32 %v1296, %v1305
    %v1308 = vmul.f32 %v1298, %v1306
    %v1309 = vpack.c.bf16 %v1308, %v1307
    %1310 = vrot.lane.b32.xlu0 %v1096, 40
    %v1311 = vpop.permute.xlu0 %1310
    %v1314 = vsel %vm365, %v1309, 0
    %1316 = vmatpush.bf16.msra.mxu0 0
    %1317 = vmatpush.bf16.msra.mxu0 0
    %1318 = vmatpush.bf16.msra.mxu0 0
    %1319 = vmatpush.bf16.msra.mxu0 0
    %1320 = vmatpush.bf16.msra.mxu0 0
    %1321 = vmatpush.bf16.msra.mxu0 0
    %1322 = vmatpush.bf16.msra.mxu0 0
    %1323 = vmatpush.bf16.msra.mxu0 %v1311
    %1324 = vmatmul.bf16.gmra.mxu0 %v1314
    %v1325 = vpop.f32.mrf.mxu0
    %v1326 = vadd.f32 0.0, %v1325
    %v1327 = vpop.f32.mrf.mxu0
    %v1328 = vadd.f32 0.0, %v1327
    %1329 = vdwg.mxu0
    %1332 = vrot.lane.b32.xlu0 %v1184, 8
    %v1333 = vpop.permute.xlu0 %1332
    %1334 = vrot.lane.b32.xlu0 %v1186, 8
    %v1335 = vpop.permute.xlu0 %1334
    %1340 = vrot.lane.b32.xlu0 %v1255, 16
    %v1341 = vpop.permute.xlu0 %1340
    %1342 = vrot.lane.b32.xlu0 %v1257, 16
    %v1343 = vpop.permute.xlu0 %1342
    %1348 = vrot.lane.b32.xlu0 %v1326, 24
    %v1349 = vpop.permute.xlu0 %1348
    %1350 = vrot.lane.b32.xlu0 %v1328, 24
    %v1351 = vpop.permute.xlu0 %1350
    %v1354 = vsel %vm340, %v1113, %v1333
    %v1355 = vsel %vm340, %v1115, %v1335
    %v1356 = vsel %vm365, %v1354, %v1341
    %v1357 = vsel %vm365, %v1355, %v1343
    %v1358 = vsel %vm655, %v1356, %v1349
    %v1359 = vsel %vm655, %v1357, %v1351
    %v1360 = vpack.c.bf16 %v1359, %v1358
    %s1361 = scalar_lea.vmem %s7, 16
    %v1362 = vld [vmem:[%s1361] sm:$0xf]
    %v1363 = vld [vmem:[%s1361 + $0x4] sm:$0xf]
    %v1364 = vld [vmem:[%s1361 + $0x8] sm:$0xf]
    %v1365 = vld [vmem:[%s1361 + $0xc] sm:$0xf]
    %v1370 = vunpack.c.l.b16 %v1362
    %v1371 = vunpack.c.l.b16 %v1363
    %v1372 = vunpack.c.l.b16 %v1364
    %v1373 = vunpack.c.l.b16 %v1365
    %v1374 = vpack.c.b16 %v1371, %v1370
    %v1375 = vpack.c.b16 %v1373, %v1372
    %v1379 = vsel %vm155, %v1360, 0
    %1381 = vmatpush.bf16.msra.mxu0 0
    %1382 = vmatpush.bf16.msra.mxu0 0
    %1383 = vmatpush.bf16.msra.mxu0 0
    %1384 = vmatpush.bf16.msra.mxu0 0
    %1385 = vmatpush.bf16.msra.mxu0 0
    %1386 = vmatpush.bf16.msra.mxu0 0
    %1387 = vmatpush.bf16.msra.mxu0 %v1375
    %1388 = vmatpush.bf16.msra.mxu0 %v1374
    %1389 = vmatmul.bf16.gmra.mxu0 %v1379
    %v1390 = vpop.f32.mrf.mxu0
    %v1391 = vadd.f32 0.0, %v1390
    %v1392 = vpop.f32.mrf.mxu0
    %v1393 = vadd.f32 0.0, %v1392
    %1394 = vdwg.mxu0
    %v1395 = vadd.f32 %v869, %v1391
    %v1396 = vadd.f32 %v870, %v1393
    %s1397 = scalar_lea.vmem %s8, 1
    %v1398 = vld [vmem:[%s1397] sm:$0x1]
    %v1399 = vmul.f32 %v1395, %v1395
    %v1400 = vmul.f32 %v1396, %v1396
    %v1401 = vsel %vm155, %v1399, 0.0
    %1402 = vadd.xlane.f32.xlu0 %v1401
    %v1403 = vpop.xlane.xlu0 %1402
    %v1404 = vsel %vm155, %v1400, 0.0
    %1405 = vadd.xlane.f32.xlu0 %v1404
    %v1406 = vpop.xlane.xlu0 %1405
    %v1407 = vmul.f32 %v1403, %v168
    %v1408 = vmul.f32 %v1406, %v168
    %v1409 = vadd.f32 %v1407, 1e-06
    %v1410 = vadd.f32 %v1408, 1e-06
    %v1411 = vrsqrt.pop %v1409
    %v1412 = vmul.f32 %v1411, %v1409
    %v1413 = vmul.f32 %v1412, %v1411
    %v1414 = vmul.f32 0.5, %v1413
    %v1415 = vsub.f32 1.5, %v1414
    %v1416 = vmul.f32 %v1411, %v1415
    %vm1417 = vweird.f32 %v1409
    %vm1418 = vweird.f32 %v1411
    %vm1419 = vmor %vm1417, %vm1418
    %v1420 = vsel %vm1419, %v1411, %v1416
    %v1421 = vrsqrt.pop %v1410
    %v1422 = vmul.f32 %v1421, %v1410
    %v1423 = vmul.f32 %v1422, %v1421
    %v1424 = vmul.f32 0.5, %v1423
    %v1425 = vsub.f32 1.5, %v1424
    %v1426 = vmul.f32 %v1421, %v1425
    %vm1427 = vweird.f32 %v1410
    %vm1428 = vweird.f32 %v1421
    %vm1429 = vmor %vm1427, %vm1428
    %v1430 = vsel %vm1429, %v1421, %v1426
    %v1431 = vmul.f32 %v1395, %v1420
    %v1432 = vmul.f32 %v1396, %v1430
    %v1434 = vperm.slane %v1398, 0
    %v1436 = vmul.f32 %v1431, %v1434
    %v1437 = vmul.f32 %v1432, %v1434
    %v1438 = vpack.c.bf16 %v1437, %v1436
    %s1439 = scalar_lea.vmem [#allocation10], 16
    %v1440 = vld [vmem:[%s1439] sm:$0xf]
    %v1441 = vld [vmem:[%s1439 + $0x4] sm:$0xf]
    %v1442 = vld [vmem:[%s1439 + $0x8] sm:$0xf]
    %v1443 = vld [vmem:[%s1439 + $0xc] sm:$0xf]
    %v1448 = vunpack.c.l.b16 %v1440
    %v1449 = vunpack.c.l.b16 %v1441
    %v1450 = vunpack.c.l.b16 %v1442
    %v1451 = vunpack.c.l.b16 %v1443
    %v1452 = vpack.c.b16 %v1449, %v1448
    %v1453 = vpack.c.b16 %v1451, %v1450
    %v1457 = vsel %vm155, %v1438, 0
    %1459 = vmatpush.bf16.msra.mxu0 0
    %1460 = vmatpush.bf16.msra.mxu0 0
    %1461 = vmatpush.bf16.msra.mxu0 0
    %1462 = vmatpush.bf16.msra.mxu0 0
    %1463 = vmatpush.bf16.msra.mxu0 0
    %1464 = vmatpush.bf16.msra.mxu0 0
    %1465 = vmatpush.bf16.msra.mxu0 %v1453
    %1466 = vmatpush.bf16.msra.mxu0 %v1452
    %1467 = vmatmul.bf16.gmra.mxu0 %v1457
    %v1468 = vpop.f32.mrf.mxu0
    %v1469 = vadd.f32 0.0, %v1468
    %v1470 = vpop.f32.mrf.mxu0
    %v1471 = vadd.f32 0.0, %v1470
    %1472 = vdwg.mxu0
    %v1473 = vsub.f32 0.0, %v1469
    %v1474 = vsub.f32 0.0, %v1471
    %v1475 = vmul.f32 %v1473, 1.442695
    %v1476 = vpow.pop %v1475
    %v1477 = vmul.f32 %v1474, 1.442695
    %v1478 = vpow.pop %v1477
    %v1479 = vadd.f32 %v1476, 1.0
    %v1480 = vadd.f32 %v1478, 1.0
    %v1481 = vrcp.pop %v1479
    %v1482 = vmul.f32 %v1479, %v1481
    %v1483 = vsub.f32 1.0, %v1482
    %v1484 = vmul.f32 %v1481, %v1483
    %v1485 = vadd.f32 %v1481, %v1484
    %vm1486 = vweird.f32 %v1479
    %vm1487 = vweird.f32 %v1481
    %vm1488 = vmor %vm1486, %vm1487
    %v1489 = vsel %vm1488, %v1481, %v1485
    %v1490 = vand.u32 2147483647, %v1479
    %vm1491 = vcmp.eq.f32.partialorder %v1490, 8.507059e+37
    %v1492 = vand.u32 %v1479, 2147483648
    %v1493 = vor.u32 1.1754944e-38, %v1492
    %v1494 = vsel %vm1491, %v1493, %v1489
    %v1495 = vmul.f32 1.0, %v1494
    %v1496 = vrcp.pop %v1480
    %v1497 = vmul.f32 %v1480, %v1496
    %v1498 = vsub.f32 1.0, %v1497
    %v1499 = vmul.f32 %v1496, %v1498
    %v1500 = vadd.f32 %v1496, %v1499
    %vm1501 = vweird.f32 %v1480
    %vm1502 = vweird.f32 %v1496
    %vm1503 = vmor %vm1501, %vm1502
    %v1504 = vsel %vm1503, %v1496, %v1500
    %v1505 = vand.u32 2147483647, %v1480
    %vm1506 = vcmp.eq.f32.partialorder %v1505, 8.507059e+37
    %v1507 = vand.u32 %v1480, 2147483648
    %v1508 = vor.u32 1.1754944e-38, %v1507
    %v1509 = vsel %vm1506, %v1508, %v1504
    %v1510 = vmul.f32 1.0, %v1509
    %v1511 = vmul.f32 %v1469, %v1495
    %v1512 = vmul.f32 %v1471, %v1510
    %1515 = vrot.lane.b32.xlu0 %v1469, 64
    %v1516 = vpop.permute.xlu0 %1515
    %1517 = vrot.lane.b32.xlu0 %v1471, 64
    %v1518 = vpop.permute.xlu0 %1517
    %v1521 = vmul.f32 %v1511, %v1516
    %v1522 = vmul.f32 %v1512, %v1518
    %v1523 = vpack.c.bf16 %v1522, %v1521
    %s1524 = scalar_lea.vmem %s10, 32
    %v1525 = vld [vmem:[%s1524] sm:$0xf]
    %v1526 = vld [vmem:[%s1524 + $0x4] sm:$0xf]
    %v1527 = vld [vmem:[%s1524 + $0x8] sm:$0xf]
    %v1528 = vld [vmem:[%s1524 + $0xc] sm:$0xf]
    %v1529 = vld [vmem:[%s1524 + $0x10] sm:$0xf]
    %v1530 = vld [vmem:[%s1524 + $0x14] sm:$0xf]
    %v1531 = vld [vmem:[%s1524 + $0x18] sm:$0xf]
    %v1532 = vld [vmem:[%s1524 + $0x1c] sm:$0xf]
    %v1541 = vunpack.c.l.b16 %v1525
    %v1542 = vunpack.c.l.b16 %v1526
    %v1543 = vunpack.c.l.b16 %v1527
    %v1544 = vunpack.c.l.b16 %v1528
    %v1545 = vunpack.c.l.b16 %v1529
    %v1546 = vunpack.c.l.b16 %v1530
    %v1547 = vunpack.c.l.b16 %v1531
    %v1548 = vunpack.c.l.b16 %v1532
    %v1549 = vpack.c.b16 %v1542, %v1541
    %v1550 = vpack.c.b16 %v1544, %v1543
    %v1551 = vpack.c.b16 %v1546, %v1545
    %v1552 = vpack.c.b16 %v1548, %v1547
    %v1558 = vsel %vm851, %v1523, 0
    %1560 = vmatpush.bf16.msra.mxu0 0
    %1561 = vmatpush.bf16.msra.mxu0 0
    %1562 = vmatpush.bf16.msra.mxu0 0
    %1563 = vmatpush.bf16.msra.mxu0 0
    %1564 = vmatpush.bf16.msra.mxu0 %v1552
    %1565 = vmatpush.bf16.msra.mxu0 %v1551
    %1566 = vmatpush.bf16.msra.mxu0 %v1550
    %1567 = vmatpush.bf16.msra.mxu0 %v1549
    %1568 = vmatmul.bf16.gmra.mxu0 %v1558
    %v1569 = vpop.f32.mrf.mxu0
    %v1570 = vadd.f32 0.0, %v1569
    %v1571 = vpop.f32.mrf.mxu0
    %v1572 = vadd.f32 0.0, %v1571
    %1573 = vdwg.mxu0
    %v1574 = vadd.f32 %v1395, %v1570
    %v1575 = vadd.f32 %v1396, %v1572
    %v1576 = vld [vmem:[%s11] sm:$0x1]
    %v1577 = vmul.f32 %v1574, %v1574
    %v1578 = vmul.f32 %v1575, %v1575
    %v1579 = vsel %vm155, %v1577, 0.0
    %1580 = vadd.xlane.f32.xlu0 %v1579
    %v1581 = vpop.xlane.xlu0 %1580
    %v1582 = vsel %vm155, %v1578, 0.0
    %1583 = vadd.xlane.f32.xlu0 %v1582
    %v1584 = vpop.xlane.xlu0 %1583
    %v1585 = vmul.f32 %v1581, %v168
    %v1586 = vmul.f32 %v1584, %v168
    %v1587 = vadd.f32 %v1585, 1e-06
    %v1588 = vadd.f32 %v1586, 1e-06
    %v1589 = vrsqrt.pop %v1587
    %v1590 = vmul.f32 %v1589, %v1587
    %v1591 = vmul.f32 %v1590, %v1589
    %v1592 = vmul.f32 0.5, %v1591
    %v1593 = vsub.f32 1.5, %v1592
    %v1594 = vmul.f32 %v1589, %v1593
    %vm1595 = vweird.f32 %v1587
    %vm1596 = vweird.f32 %v1589
    %vm1597 = vmor %vm1595, %vm1596
    %v1598 = vsel %vm1597, %v1589, %v1594
    %v1599 = vrsqrt.pop %v1588
    %v1600 = vmul.f32 %v1599, %v1588
    %v1601 = vmul.f32 %v1600, %v1599
    %v1602 = vmul.f32 0.5, %v1601
    %v1603 = vsub.f32 1.5, %v1602
    %v1604 = vmul.f32 %v1599, %v1603
    %vm1605 = vweird.f32 %v1588
    %vm1606 = vweird.f32 %v1599
    %vm1607 = vmor %vm1605, %vm1606
    %v1608 = vsel %vm1607, %v1599, %v1604
    %v1609 = vmul.f32 %v1574, %v1598
    %v1610 = vmul.f32 %v1575, %v1608
    %v1612 = vperm.slane %v1576, 0
    %v1614 = vmul.f32 %v1609, %v1612
    %v1615 = vmul.f32 %v1610, %v1612
    %v1616 = vpack.c.bf16 %v1615, %v1614
    %v1617 = vld [vmem:[#allocation11] sm:$0xf]
    %v1618 = vld [vmem:[#allocation11 + $0x4] sm:$0xf]
    %v1619 = vld [vmem:[#allocation11 + $0x8] sm:$0xf]
    %v1620 = vld [vmem:[#allocation11 + $0xc] sm:$0xf]
    %v1625 = vunpack.c.l.b16 %v1617
    %v1626 = vunpack.c.l.b16 %v1618
    %v1627 = vunpack.c.l.b16 %v1619
    %v1628 = vunpack.c.l.b16 %v1620
    %v1629 = vpack.c.b16 %v1626, %v1625
    %v1630 = vpack.c.b16 %v1628, %v1627
    %v1634 = vsel %vm155, %v1616, 0
    %1636 = vmatpush.bf16.msra.mxu0 0
    %1637 = vmatpush.bf16.msra.mxu0 0
    %1638 = vmatpush.bf16.msra.mxu0 0
    %1639 = vmatpush.bf16.msra.mxu0 0
    %1640 = vmatpush.bf16.msra.mxu0 0
    %1641 = vmatpush.bf16.msra.mxu0 0
    %1642 = vmatpush.bf16.msra.mxu0 %v1630
    %1643 = vmatpush.bf16.msra.mxu0 %v1629
    %1644 = vmatmul.bf16.gmra.mxu0 %v1634
    %v1645 = vpop.f32.mrf.mxu0
    %v1646 = vadd.f32 0.0, %v1645
    %v1647 = vpop.f32.mrf.mxu0
    %v1648 = vadd.f32 0.0, %v1647
    %1649 = vdwg.mxu0
    %1650 = vst [vmem:[#allocation13] sm:$0xff] %v1646
    %1651 = vst [vmem:[#allocation13 + $0x8] sm:$0xff] %v1648
    // Predicated region
    $region78: #{tpu_custom_call.1} parent=1 // pred_check
      _
    $region79: #{tpu_custom_call.1} parent=1 // pred_check_branch
      %1653 = sbr.rel (0) target = $region81
    $region80: #{tpu_custom_call.1} parent=1 // pred_region
      %1655 = vsyncadd [#allocation4], 0
      %s1656 = sshll.u32 [#allocation13], 4
      %s1657 = int_to_ptr.vmem [resolvable:$true] %s1656
      %s1658 = sshll.u32 %s13, 4
      %s1659 = int_to_ptr.hbm [resolvable:$true] %s1658
      %1664 = dma.vmem_to_hbm [thread:$0]  %s1657, 256, %s1659, [#allocation4], 128, 128, 8
    $region81: #{tpu_custom_call.1} parent=1 // pred_fallthru
      _
    // Predicated region
    $region82: #{tpu_custom_call.1} parent=1 // pred_check
      _
    $region83: #{tpu_custom_call.1} parent=1 // pred_check_branch
      %1666 = sbr.rel (0) target = $region85
    $region84: #{tpu_custom_call.1} parent=1 // pred_region
      %1668 = dma.done [#allocation4], 256
    $region85: #{tpu_custom_call.1} parent=1 // pred_fallthru
      _
    %1669 = vsyncpa [#allocation3], 1
    %1670 = vsyncpa [#allocation6], 1
    %1671 = vsyncpa [#allocation9], 1
    %1672 = vsyncpa [#allocation12], 1
    %1673 = vsyncpa [#allocation4], 1

</llo_original>
